<compile_context>
chip_gen: v7x
topology: tpu7x:2x2x1
jax: 0.10.0
libtpu: 0.0.40
codegen_flags: <defaults>
</compile_context>

<pallas_src>
import functools
import math

import jax
import jax.numpy as jnp
from jax.experimental import pallas as pl
from jax.experimental.pallas import tpu as pltpu

# ----------------------- synthetic BERT config -----------------------
VOCAB = 100
MAX_POS = 16
HIDDEN = 32
N_HEADS = 2
HEAD_DIM = HIDDEN // N_HEADS
N_LAYERS = 2
INTERMEDIATE = 64
NUM_LABELS = 3
FEATURE_DIM = 4
CLS_HIDDEN = 256
LN_EPS = 1e-12

# ---- packed small-parameter table (all biases / LN params in ONE array) ----
VEC_W = 256                                # >= max(3*HIDDEN, INTERMEDIATE, CLS_HIDDEN)
ROW_EMB_LN_G = 0
ROW_EMB_LN_B = 1
_LAYER_BASE = 2
_LAYER_STRIDE = 8
(OFF_QKV_B, OFF_O_B, OFF_LN1_G, OFF_LN1_B,
 OFF_I_B, OFF_O2_B, OFF_LN2_G, OFF_LN2_B) = range(8)
ROW_CLS_B1 = _LAYER_BASE + _LAYER_STRIDE * N_LAYERS
ROW_CLS_B2 = ROW_CLS_B1 + 1
N_VEC_ROWS = ROW_CLS_B2 + 1                # 20


# --------------------------- fused kernel -----------------------------
def _fused_forward_kernel(*refs, S, compute_loss):
    it = iter(refs)
    emb_ref = next(it)            # (S, HIDDEN) f32  -- this batch element
    mask_ref = next(it)           # (1, S) f32 (1 = keep, 0 = pad)
    feat_ref = next(it)           # (1, FEATURE_DIM) f32
    labels_ref = next(it) if compute_loss else None    # (1, 1) int32
    vecs_ref = next(it)           # (N_VEC_ROWS, VEC_W) f32 packed biases/LN
    qkv_w_ref = next(it)          # (L, H, 3H) bf16
    o_w_ref = next(it)            # (L, H, H)  bf16
    i_w_ref = next(it)            # (L, H, I)  bf16
    o2_w_ref = next(it)           # (L, I, H)  bf16
    w1h_ref = next(it)            # (H, CLS_HIDDEN) bf16
    w1f_ref = next(it)            # (FEATURE_DIM, CLS_HIDDEN) bf16
    w2_ref = next(it)             # (CLS_HIDDEN, NUM_LABELS) bf16
    logits_ref = next(it)         # (1, NUM_LABELS) f32
    nll_ref = next(it) if compute_loss else None        # (1, 1) f32

    def vec(row, width):          # one packed small-param row -> (1, width) f32
        return vecs_ref[row:row + 1, :width]

    def layer_norm(x, g, b):      # f32 elementwise (v5e-friendly)
        mu = jnp.mean(x, axis=-1, keepdims=True)
        var = jnp.mean(jnp.square(x - mu), axis=-1, keepdims=True)
        return (x - mu) * jax.lax.rsqrt(var + LN_EPS) * g + b

    def gelu(y):
        # tanh-approx GELU (HF BERT uses erf-GELU; tanh kept for robust lowering)
        return 0.5 * y * (1.0 + jnp.tanh(0.7978845608028654 *
                                         (y + 0.044715 * y * y * y)))

    def mm(a, b):                 # bf16 MXU matmul, f32 accumulation
        return jnp.dot(a.astype(jnp.bfloat16), b,
                       preferred_element_type=jnp.float32)

    # ---- embeddings LayerNorm ----
    x = layer_norm(emb_ref[...], vec(ROW_EMB_LN_G, HIDDEN),
                   vec(ROW_EMB_LN_B, HIDDEN))                      # (S, H) f32
    add_mask = (1.0 - mask_ref[...]) * -10000.0                    # (1, S) key-axis mask
    scale = 1.0 / math.sqrt(HEAD_DIM)

    # ---- encoder layers (unrolled; all intermediates in vregs) ----
    for l in range(N_LAYERS):
        base = _LAYER_BASE + _LAYER_STRIDE * l
        qkv_w = qkv_w_ref[l]
        o_w = o_w_ref[l]
        i_w = i_w_ref[l]
        o2_w = o2_w_ref[l]

        # fused QKV projection: (S, 3H)
        qkv = mm(x, qkv_w) + vec(base + OFF_QKV_B, 3 * HIDDEN)

        # attention: per-head loop; output projection folded per head
        # (no ctx scratch, no masked column stores)
        attn = jnp.zeros((S, HIDDEN), jnp.float32)
        for h in range(N_HEADS):
            c0 = h * HEAD_DIM
            q_h = qkv[:, c0:c0 + HEAD_DIM]
            k_h = qkv[:, HIDDEN + c0:HIDDEN + c0 + HEAD_DIM]
            v_h = qkv[:, 2 * HIDDEN + c0:2 * HIDDEN + c0 + HEAD_DIM]
            s = jax.lax.dot_general(
                q_h.astype(jnp.bfloat16), k_h.astype(jnp.bfloat16),
                dimension_numbers=(((1,), (1,)), ((), ())),
                preferred_element_type=jnp.float32) * scale + add_mask  # (S, S)
            s = s - jnp.max(s, axis=-1, keepdims=True)
            p = jnp.exp(s)
            p = p * pl.reciprocal(jnp.sum(p, axis=-1, keepdims=True),
                                  approx=True)
            ctx_h = mm(p, v_h.astype(jnp.bfloat16))                 # (S, dh)
            attn = attn + mm(ctx_h, o_w[c0:c0 + HEAD_DIM, :])       # (S, H)
        attn = attn + vec(base + OFF_O_B, HIDDEN)

        # residual + LayerNorm (fused)
        x = layer_norm(x + attn, vec(base + OFF_LN1_G, HIDDEN),
                       vec(base + OFF_LN1_B, HIDDEN))

        # FFN + residual + LayerNorm (fused)
        inter = gelu(mm(x, i_w) + vec(base + OFF_I_B, INTERMEDIATE))
        ffn = mm(inter, o2_w) + vec(base + OFF_O2_B, HIDDEN)
        x = layer_norm(x + ffn, vec(base + OFF_LN2_G, HIDDEN),
                       vec(base + OFF_LN2_B, HIDDEN))

    # ---- [CLS] pooling: row 0 of this sequence (value slice, no scratch) ----
    pooled = x[0:1, :]                                              # (1, H)

    # ---- classifier MLP (feature concat as split-weight matmuls) ----
    h1 = (mm(pooled, w1h_ref[...]) + mm(feat_ref[...], w1f_ref[...])
          + vec(ROW_CLS_B1, CLS_HIDDEN))
    h1 = jnp.maximum(h1, 0.0)
    # torch.nn.Dropout(0.2) is identity at inference (eval mode).
    logits = mm(h1, w2_ref[...]) + vec(ROW_CLS_B2, NUM_LABELS)      # (1, C)
    logits_ref[...] = logits

    # ---- per-example cross-entropy (mean over batch done in wrapper) ----
    if compute_loss:
        lab = labels_ref[...]                                       # (1, 1)
        m = jnp.max(logits, axis=-1, keepdims=True)
        lse = jnp.log(jnp.sum(jnp.exp(logits - m), axis=-1, keepdims=True)) + m
        cols = jax.lax.broadcasted_iota(jnp.int32, logits.shape, 1)
        picked = jnp.sum(jnp.where(cols == lab, logits, 0.0),
                         axis=-1, keepdims=True)
        nll_ref[...] = lse - picked


# --------------------------- model forward ----------------------------
def _full_block_spec(shape):
    nd = len(shape)
    return pl.BlockSpec(shape, lambda b, _nd=nd: (0,) * _nd)


def hybrid_bert_forward(params, input_ids, attention_mask, features=None,
                        labels=None):
    B, S = input_ids.shape
    # Embedding lookup is XLA glue (one tiny gather); LayerNorm happens in-kernel.
    # TODO(synk): move the gather in-kernel via scalar-prefetched input_ids.
    emb = (params["word_emb"][input_ids]
           + params["pos_emb"][:S][None, :, :]
           + params["type_emb"][0][None, None, :]).astype(jnp.float32)  # (B,S,H)
    mask_f = attention_mask.astype(jnp.float32).reshape(B, 1, S)
    if features is None:
        features = jnp.zeros((B, FEATURE_DIM), jnp.float32)
    feat = features.astype(jnp.float32).reshape(B, 1, FEATURE_DIM)

    compute_loss = labels is not None

    inputs = [emb, mask_f, feat]
    in_specs = [
        pl.BlockSpec((None, S, HIDDEN), lambda b: (b, 0, 0)),
        pl.BlockSpec((None, 1, S), lambda b: (b, 0, 0)),
        pl.BlockSpec((None, 1, FEATURE_DIM), lambda b: (b, 0, 0)),
    ]
    if compute_loss:
        inputs.append(labels.reshape(B, 1, 1).astype(jnp.int32))
        in_specs.append(pl.BlockSpec((None, 1, 1), lambda b: (b, 0, 0)))

    weights = [params["vecs"], params["qkv_w"], params["o_w"], params["i_w"],
               params["o2_w"], params["cls_w1h"], params["cls_w1f"],
               params["cls_w2"]]
    inputs += weights
    in_specs += [_full_block_spec(w.shape) for w in weights]

    out_shapes = [jax.ShapeDtypeStruct((B, 1, NUM_LABELS), jnp.float32)]
    out_specs = [pl.BlockSpec((None, 1, NUM_LABELS), lambda b: (b, 0, 0))]
    if compute_loss:
        out_shapes.append(jax.ShapeDtypeStruct((B, 1, 1), jnp.float32))
        out_specs.append(pl.BlockSpec((None, 1, 1), lambda b: (b, 0, 0)))

    outs = pl.pallas_call(
        functools.partial(_fused_forward_kernel, S=S,
                          compute_loss=compute_loss),
        out_shape=tuple(out_shapes),
        grid=(B,),
        in_specs=in_specs,
        out_specs=tuple(out_specs),
        compiler_params=pltpu.CompilerParams(
            dimension_semantics=("parallel",)),   # batch-parallel (both v7x TCs)
    )(*inputs)

    logits = outs[0].reshape(B, NUM_LABELS)
    loss = jnp.mean(outs[1]) if compute_loss else None
    return {"loss": loss, "logits": logits}


# --------------------------- deterministic init ------------------------
def init_params(key):
    kiter = iter(jax.random.split(key, 64))

    def nrm(shape, s=0.02, dtype=jnp.float32):
        return (jax.random.normal(next(kiter), shape, jnp.float32) * s).astype(dtype)

    def pad_row(v):
        return jnp.pad(v, (0, VEC_W - v.shape[0]))

    # packed small-parameter table: LN gains = 1, all biases = 0
    rows = [None] * N_VEC_ROWS
    rows[ROW_EMB_LN_G] = pad_row(jnp.ones((HIDDEN,), jnp.float32))
    rows[ROW_EMB_LN_B] = pad_row(jnp.zeros((HIDDEN,), jnp.float32))
    for l in range(N_LAYERS):
        base = _LAYER_BASE + _LAYER_STRIDE * l
        rows[base + OFF_QKV_B] = pad_row(jnp.zeros((3 * HIDDEN,), jnp.float32))
        rows[base + OFF_O_B] = pad_row(jnp.zeros((HIDDEN,), jnp.float32))
        rows[base + OFF_LN1_G] = pad_row(jnp.ones((HIDDEN,), jnp.float32))
        rows[base + OFF_LN1_B] = pad_row(jnp.zeros((HIDDEN,), jnp.float32))
        rows[base + OFF_I_B] = pad_row(jnp.zeros((INTERMEDIATE,), jnp.float32))
        rows[base + OFF_O2_B] = pad_row(jnp.zeros((HIDDEN,), jnp.float32))
        rows[base + OFF_LN2_G] = pad_row(jnp.ones((HIDDEN,), jnp.float32))
        rows[base + OFF_LN2_B] = pad_row(jnp.zeros((HIDDEN,), jnp.float32))
    rows[ROW_CLS_B1] = pad_row(jnp.zeros((CLS_HIDDEN,), jnp.float32))
    rows[ROW_CLS_B2] = pad_row(jnp.zeros((NUM_LABELS,), jnp.float32))
    vecs = jnp.stack(rows, axis=0)                       # (N_VEC_ROWS, VEC_W)

    params = {
        "word_emb": nrm((VOCAB, HIDDEN)),
        "pos_emb": nrm((MAX_POS, HIDDEN)),
        "type_emb": nrm((2, HIDDEN)),
        "vecs": vecs,
        # matmul weights stored bf16 (MXU-native; half the weight DMA/VMEM)
        "qkv_w": nrm((N_LAYERS, HIDDEN, 3 * HIDDEN), dtype=jnp.bfloat16),
        "o_w": nrm((N_LAYERS, HIDDEN, HIDDEN), dtype=jnp.bfloat16),
        "i_w": nrm((N_LAYERS, HIDDEN, INTERMEDIATE), dtype=jnp.bfloat16),
        "o2_w": nrm((N_LAYERS, INTERMEDIATE, HIDDEN), dtype=jnp.bfloat16),
        # classifier Linear(HIDDEN+FEATURE_DIM, 256) split into pooled/feature parts
        "cls_w1h": nrm((HIDDEN, CLS_HIDDEN), dtype=jnp.bfloat16),
        "cls_w1f": nrm((FEATURE_DIM, CLS_HIDDEN), dtype=jnp.bfloat16),
        "cls_w2": nrm((CLS_HIDDEN, NUM_LABELS), dtype=jnp.bfloat16),
    }
    return params


# -------------------------------- main ---------------------------------
if __name__ == "__main__":
    key = jax.random.PRNGKey(0)
    pk, ik, fk = jax.random.split(key, 3)
    params = init_params(pk)

    B, S = 2, 8
    input_ids = jax.random.randint(ik, (B, S), 0, VOCAB, dtype=jnp.int32)
    attention_mask = jnp.array([[1, 1, 1, 1, 1, 1, 1, 1],
                                [1, 1, 1, 1, 1, 1, 0, 0]], dtype=jnp.int32)
    features = jax.random.normal(fk, (B, FEATURE_DIM), jnp.float32)
    labels = jnp.array([0, 2], dtype=jnp.int32)

    fwd = jax.jit(hybrid_bert_forward)
    out = fwd(params, input_ids, attention_mask, features, labels)
    jax.block_until_ready(out["logits"])
    jax.block_until_ready(out["loss"])
    print("KERNEL_OK")
</pallas_src>

<mosaic_0001>
module attributes {stable_mosaic.version = 11 : i64} {
  func.func @_fused_forward_kernel(%arg0: i32, %arg1: memref<1x8x32xf32, #tpu.memory_space<vmem>>, %arg2: memref<1x1x8xf32, #tpu.memory_space<vmem>>, %arg3: memref<1x1x4xf32, #tpu.memory_space<vmem>>, %arg4: memref<1x1x1xi32, #tpu.memory_space<vmem>>, %arg5: memref<20x256xf32, #tpu.memory_space<vmem>>, %arg6: memref<2x32x96xbf16, #tpu.memory_space<vmem>>, %arg7: memref<2x32x32xbf16, #tpu.memory_space<vmem>>, %arg8: memref<2x32x64xbf16, #tpu.memory_space<vmem>>, %arg9: memref<2x64x32xbf16, #tpu.memory_space<vmem>>, %arg10: memref<32x256xbf16, #tpu.memory_space<vmem>>, %arg11: memref<4x256xbf16, #tpu.memory_space<vmem>>, %arg12: memref<256x3xbf16, #tpu.memory_space<vmem>>, %arg13: memref<1x1x3xf32, #tpu.memory_space<vmem>>, %arg14: memref<1x1x1xf32, #tpu.memory_space<vmem>>) attributes {dimension_semantics = [#tpu.dimension_semantics<parallel>], iteration_bounds = array<i64: 2>, scalar_prefetch = 0 : i64, scratch_operands = 0 : i64, tpu.core_type = #tpu.core_type<tc>, window_params = [{transform_indices = @transform_0, window_bounds = array<i64: 1, 8, 32>}, {transform_indices = @transform_1, window_bounds = array<i64: 1, 1, 8>}, {transform_indices = @transform_2, window_bounds = array<i64: 1, 1, 4>}, {transform_indices = @transform_3, window_bounds = array<i64: 1, 1, 1>}, {pipeline_mode = #tpu.pipeline_mode<synchronous>, transform_indices = @transform_4, window_bounds = array<i64: 20, 256>}, {pipeline_mode = #tpu.pipeline_mode<synchronous>, transform_indices = @transform_5, window_bounds = array<i64: 2, 32, 96>}, {pipeline_mode = #tpu.pipeline_mode<synchronous>, transform_indices = @transform_6, window_bounds = array<i64: 2, 32, 32>}, {pipeline_mode = #tpu.pipeline_mode<synchronous>, transform_indices = @transform_7, window_bounds = array<i64: 2, 32, 64>}, {pipeline_mode = #tpu.pipeline_mode<synchronous>, transform_indices = @transform_8, window_bounds = array<i64: 2, 64, 32>}, {pipeline_mode = #tpu.pipeline_mode<synchronous>, transform_indices = @transform_9, window_bounds = array<i64: 32, 256>}, {pipeline_mode = #tpu.pipeline_mode<synchronous>, transform_indices = @transform_10, window_bounds = array<i64: 4, 256>}, {pipeline_mode = #tpu.pipeline_mode<synchronous>, transform_indices = @transform_11, window_bounds = array<i64: 256, 3>}, {transform_indices = @transform_12, window_bounds = array<i64: 1, 1, 3>}, {transform_indices = @transform_13, window_bounds = array<i64: 1, 1, 1>}]} {
    %c0 = arith.constant 0 : index
    %c0_0 = arith.constant 0 : index
    %c0_1 = arith.constant 0 : index
    %0 = vector.load %arg1[%c0, %c0_0, %c0_1] : memref<1x8x32xf32, #tpu.memory_space<vmem>>, vector<1x8x32xf32>
    %1 = vector.shape_cast %0 : vector<1x8x32xf32> to vector<8x32xf32>
    %c0_2 = arith.constant 0 : index
    %c0_3 = arith.constant 0 : index
    %2 = vector.load %arg5[%c0_2, %c0_3] : memref<20x256xf32, #tpu.memory_space<vmem>>, vector<1x32xf32>
    %c1 = arith.constant 1 : index
    %c0_4 = arith.constant 0 : index
    %3 = vector.load %arg5[%c1, %c0_4] : memref<20x256xf32, #tpu.memory_space<vmem>>, vector<1x32xf32>
    %cst = arith.constant dense<0.000000e+00> : vector<8xf32>
    %4 = vector.multi_reduction <add>, %1, %cst [1] : vector<8x32xf32> to vector<8xf32>
    %5 = vector.shape_cast %4 : vector<8xf32> to vector<8x1xf32>
    %cst_5 = arith.constant 3.200000e+01 : f32
    %6 = vector.broadcast %cst_5 : f32 to vector<8x1xf32>
    %7 = arith.divf %5, %6 : vector<8x1xf32>
    %8 = vector.broadcast %7 : vector<8x1xf32> to vector<8x32xf32>
    %9 = arith.subf %1, %8 : vector<8x32xf32>
    %10 = arith.mulf %9, %9 : vector<8x32xf32>
    %cst_6 = arith.constant dense<0.000000e+00> : vector<8xf32>
    %11 = vector.multi_reduction <add>, %10, %cst_6 [1] : vector<8x32xf32> to vector<8xf32>
    %12 = vector.shape_cast %11 : vector<8xf32> to vector<8x1xf32>
    %cst_7 = arith.constant 3.200000e+01 : f32
    %13 = vector.broadcast %cst_7 : f32 to vector<8x1xf32>
    %14 = arith.divf %12, %13 : vector<8x1xf32>
    %15 = vector.broadcast %7 : vector<8x1xf32> to vector<8x32xf32>
    %16 = arith.subf %1, %15 : vector<8x32xf32>
    %cst_8 = arith.constant 9.99999996E-13 : f32
    %17 = vector.broadcast %cst_8 : f32 to vector<8x1xf32>
    %18 = arith.addf %14, %17 : vector<8x1xf32>
    %19 = math.rsqrt %18 : vector<8x1xf32>
    %20 = vector.broadcast %19 : vector<8x1xf32> to vector<8x32xf32>
    %21 = arith.mulf %16, %20 : vector<8x32xf32>
    %22 = vector.broadcast %2 : vector<1x32xf32> to vector<8x32xf32>
    %23 = arith.mulf %21, %22 : vector<8x32xf32>
    %24 = vector.broadcast %3 : vector<1x32xf32> to vector<8x32xf32>
    %25 = arith.addf %23, %24 : vector<8x32xf32>
    %c0_9 = arith.constant 0 : index
    %c0_10 = arith.constant 0 : index
    %c0_11 = arith.constant 0 : index
    %26 = vector.load %arg2[%c0_9, %c0_10, %c0_11] : memref<1x1x8xf32, #tpu.memory_space<vmem>>, vector<1x1x8xf32>
    %27 = vector.shape_cast %26 : vector<1x1x8xf32> to vector<1x8xf32>
    %cst_12 = arith.constant 1.000000e+00 : f32
    %28 = vector.broadcast %cst_12 : f32 to vector<1x8xf32>
    %29 = arith.subf %28, %27 : vector<1x8xf32>
    %cst_13 = arith.constant -1.000000e+04 : f32
    %30 = vector.broadcast %cst_13 : f32 to vector<1x8xf32>
    %31 = arith.mulf %29, %30 : vector<1x8xf32>
    %c0_14 = arith.constant 0 : index
    %c0_15 = arith.constant 0 : index
    %c0_16 = arith.constant 0 : index
    %32 = vector.load %arg6[%c0_14, %c0_15, %c0_16] : memref<2x32x96xbf16, #tpu.memory_space<vmem>>, vector<1x32x96xbf16>
    %33 = vector.shape_cast %32 : vector<1x32x96xbf16> to vector<32x96xbf16>
    %c0_17 = arith.constant 0 : index
    %c0_18 = arith.constant 0 : index
    %c0_19 = arith.constant 0 : index
    %34 = vector.load %arg7[%c0_17, %c0_18, %c0_19] : memref<2x32x32xbf16, #tpu.memory_space<vmem>>, vector<1x32x32xbf16>
    %35 = vector.shape_cast %34 : vector<1x32x32xbf16> to vector<32x32xbf16>
    %c0_20 = arith.constant 0 : index
    %c0_21 = arith.constant 0 : index
    %c0_22 = arith.constant 0 : index
    %36 = vector.load %arg8[%c0_20, %c0_21, %c0_22] : memref<2x32x64xbf16, #tpu.memory_space<vmem>>, vector<1x32x64xbf16>
    %37 = vector.shape_cast %36 : vector<1x32x64xbf16> to vector<32x64xbf16>
    %c0_23 = arith.constant 0 : index
    %c0_24 = arith.constant 0 : index
    %c0_25 = arith.constant 0 : index
    %38 = vector.load %arg9[%c0_23, %c0_24, %c0_25] : memref<2x64x32xbf16, #tpu.memory_space<vmem>>, vector<1x64x32xbf16>
    %39 = vector.shape_cast %38 : vector<1x64x32xbf16> to vector<64x32xbf16>
    %40 = arith.truncf %25 : vector<8x32xf32> to vector<8x32xbf16>
    %cst_26 = arith.constant dense<0.000000e+00> : vector<8x96xf32>
    %41 = tpu.matmul %40, %33, %cst_26 {dimension_numbers = #tpu.dot_dimension_numbers<[1], [0], [0], [1], [0, 0, 1, 1], [], []>} : vector<8x32xbf16>, vector<32x96xbf16>, vector<8x96xf32> -> vector<8x96xf32>
    %c2 = arith.constant 2 : index
    %c0_27 = arith.constant 0 : index
    %42 = vector.load %arg5[%c2, %c0_27] : memref<20x256xf32, #tpu.memory_space<vmem>>, vector<1x96xf32>
    %43 = vector.broadcast %42 : vector<1x96xf32> to vector<8x96xf32>
    %44 = arith.addf %41, %43 : vector<8x96xf32>
    %cst_28 = arith.constant 0.000000e+00 : f32
    %45 = vector.broadcast %cst_28 : f32 to vector<8x32xf32>
    %46 = vector.extract_strided_slice %44 {offsets = [0, 0], sizes = [8, 16], strides = [1, 1]} : vector<8x96xf32> to vector<8x16xf32>
    %47 = vector.extract_strided_slice %44 {offsets = [0, 32], sizes = [8, 16], strides = [1, 1]} : vector<8x96xf32> to vector<8x16xf32>
    %48 = vector.extract_strided_slice %44 {offsets = [0, 64], sizes = [8, 16], strides = [1, 1]} : vector<8x96xf32> to vector<8x16xf32>
    %49 = arith.truncf %46 : vector<8x16xf32> to vector<8x16xbf16>
    %50 = arith.truncf %47 : vector<8x16xf32> to vector<8x16xbf16>
    %cst_29 = arith.constant dense<0.000000e+00> : vector<8x8xf32>
    %51 = tpu.matmul %49, %50, %cst_29 {dimension_numbers = #tpu.dot_dimension_numbers<[1], [1], [0], [0], [0, 0, 1, 0], [], []>} : vector<8x16xbf16>, vector<8x16xbf16>, vector<8x8xf32> -> vector<8x8xf32>
    %cst_30 = arith.constant 2.500000e-01 : f32
    %52 = vector.broadcast %cst_30 : f32 to vector<8x8xf32>
    %53 = arith.mulf %51, %52 : vector<8x8xf32>
    %54 = vector.broadcast %31 : vector<1x8xf32> to vector<8x8xf32>
    %55 = arith.addf %53, %54 : vector<8x8xf32>
    %cst_31 = arith.constant dense<0xFF800000> : vector<8xf32>
    %56 = vector.multi_reduction <maximumf>, %55, %cst_31 [1] : vector<8x8xf32> to vector<8xf32>
    %57 = vector.shape_cast %56 : vector<8xf32> to vector<8x1xf32>
    %58 = vector.broadcast %57 : vector<8x1xf32> to vector<8x8xf32>
    %59 = arith.subf %55, %58 : vector<8x8xf32>
    %60 = math.exp %59 : vector<8x8xf32>
    %cst_32 = arith.constant dense<0.000000e+00> : vector<8xf32>
    %61 = vector.multi_reduction <add>, %60, %cst_32 [1] : vector<8x8xf32> to vector<8xf32>
    %62 = vector.shape_cast %61 : vector<8xf32> to vector<8x1xf32>
    %63 = tpu.reciprocal %62 {approx = true} : vector<8x1xf32> -> vector<8x1xf32>
    %64 = vector.broadcast %63 : vector<8x1xf32> to vector<8x8xf32>
    %65 = arith.mulf %60, %64 : vector<8x8xf32>
    %66 = arith.truncf %48 : vector<8x16xf32> to vector<8x16xbf16>
    %67 = arith.truncf %65 : vector<8x8xf32> to vector<8x8xbf16>
    %cst_33 = arith.constant dense<0.000000e+00> : vector<8x16xf32>
    %68 = tpu.matmul %67, %66, %cst_33 {dimension_numbers = #tpu.dot_dimension_numbers<[1], [0], [0], [1], [0, 0, 1, 1], [], []>} : vector<8x8xbf16>, vector<8x16xbf16>, vector<8x16xf32> -> vector<8x16xf32>
    %69 = vector.extract_strided_slice %35 {offsets = [0, 0], sizes = [16, 32], strides = [1, 1]} : vector<32x32xbf16> to vector<16x32xbf16>
    %70 = arith.truncf %68 : vector<8x16xf32> to vector<8x16xbf16>
    %cst_34 = arith.constant dense<0.000000e+00> : vector<8x32xf32>
    %71 = tpu.matmul %70, %69, %cst_34 {dimension_numbers = #tpu.dot_dimension_numbers<[1], [0], [0], [1], [0, 0, 1, 1], [], []>} : vector<8x16xbf16>, vector<16x32xbf16>, vector<8x32xf32> -> vector<8x32xf32>
    %72 = arith.addf %45, %71 : vector<8x32xf32>
    %73 = vector.extract_strided_slice %44 {offsets = [0, 16], sizes = [8, 16], strides = [1, 1]} : vector<8x96xf32> to vector<8x16xf32>
    %74 = vector.extract_strided_slice %44 {offsets = [0, 48], sizes = [8, 16], strides = [1, 1]} : vector<8x96xf32> to vector<8x16xf32>
    %75 = vector.extract_strided_slice %44 {offsets = [0, 80], sizes = [8, 16], strides = [1, 1]} : vector<8x96xf32> to vector<8x16xf32>
    %76 = arith.truncf %73 : vector<8x16xf32> to vector<8x16xbf16>
    %77 = arith.truncf %74 : vector<8x16xf32> to vector<8x16xbf16>
    %cst_35 = arith.constant dense<0.000000e+00> : vector<8x8xf32>
    %78 = tpu.matmul %76, %77, %cst_35 {dimension_numbers = #tpu.dot_dimension_numbers<[1], [1], [0], [0], [0, 0, 1, 0], [], []>} : vector<8x16xbf16>, vector<8x16xbf16>, vector<8x8xf32> -> vector<8x8xf32>
    %cst_36 = arith.constant 2.500000e-01 : f32
    %79 = vector.broadcast %cst_36 : f32 to vector<8x8xf32>
    %80 = arith.mulf %78, %79 : vector<8x8xf32>
    %81 = vector.broadcast %31 : vector<1x8xf32> to vector<8x8xf32>
    %82 = arith.addf %80, %81 : vector<8x8xf32>
    %cst_37 = arith.constant dense<0xFF800000> : vector<8xf32>
    %83 = vector.multi_reduction <maximumf>, %82, %cst_37 [1] : vector<8x8xf32> to vector<8xf32>
    %84 = vector.shape_cast %83 : vector<8xf32> to vector<8x1xf32>
    %85 = vector.broadcast %84 : vector<8x1xf32> to vector<8x8xf32>
    %86 = arith.subf %82, %85 : vector<8x8xf32>
    %87 = math.exp %86 : vector<8x8xf32>
    %cst_38 = arith.constant dense<0.000000e+00> : vector<8xf32>
    %88 = vector.multi_reduction <add>, %87, %cst_38 [1] : vector<8x8xf32> to vector<8xf32>
    %89 = vector.shape_cast %88 : vector<8xf32> to vector<8x1xf32>
    %90 = tpu.reciprocal %89 {approx = true} : vector<8x1xf32> -> vector<8x1xf32>
    %91 = vector.broadcast %90 : vector<8x1xf32> to vector<8x8xf32>
    %92 = arith.mulf %87, %91 : vector<8x8xf32>
    %93 = arith.truncf %75 : vector<8x16xf32> to vector<8x16xbf16>
    %94 = arith.truncf %92 : vector<8x8xf32> to vector<8x8xbf16>
    %cst_39 = arith.constant dense<0.000000e+00> : vector<8x16xf32>
    %95 = tpu.matmul %94, %93, %cst_39 {dimension_numbers = #tpu.dot_dimension_numbers<[1], [0], [0], [1], [0, 0, 1, 1], [], []>} : vector<8x8xbf16>, vector<8x16xbf16>, vector<8x16xf32> -> vector<8x16xf32>
    %96 = vector.extract_strided_slice %35 {offsets = [16, 0], sizes = [16, 32], strides = [1, 1]} : vector<32x32xbf16> to vector<16x32xbf16>
    %97 = arith.truncf %95 : vector<8x16xf32> to vector<8x16xbf16>
    %cst_40 = arith.constant dense<0.000000e+00> : vector<8x32xf32>
    %98 = tpu.matmul %97, %96, %cst_40 {dimension_numbers = #tpu.dot_dimension_numbers<[1], [0], [0], [1], [0, 0, 1, 1], [], []>} : vector<8x16xbf16>, vector<16x32xbf16>, vector<8x32xf32> -> vector<8x32xf32>
    %99 = arith.addf %72, %98 : vector<8x32xf32>
    %c3 = arith.constant 3 : index
    %c0_41 = arith.constant 0 : index
    %100 = vector.load %arg5[%c3, %c0_41] : memref<20x256xf32, #tpu.memory_space<vmem>>, vector<1x32xf32>
    %101 = vector.broadcast %100 : vector<1x32xf32> to vector<8x32xf32>
    %102 = arith.addf %99, %101 : vector<8x32xf32>
    %103 = arith.addf %25, %102 : vector<8x32xf32>
    %c4 = arith.constant 4 : index
    %c0_42 = arith.constant 0 : index
    %104 = vector.load %arg5[%c4, %c0_42] : memref<20x256xf32, #tpu.memory_space<vmem>>, vector<1x32xf32>
    %c5 = arith.constant 5 : index
    %c0_43 = arith.constant 0 : index
    %105 = vector.load %arg5[%c5, %c0_43] : memref<20x256xf32, #tpu.memory_space<vmem>>, vector<1x32xf32>
    %cst_44 = arith.constant dense<0.000000e+00> : vector<8xf32>
    %106 = vector.multi_reduction <add>, %103, %cst_44 [1] : vector<8x32xf32> to vector<8xf32>
    %107 = vector.shape_cast %106 : vector<8xf32> to vector<8x1xf32>
    %cst_45 = arith.constant 3.200000e+01 : f32
    %108 = vector.broadcast %cst_45 : f32 to vector<8x1xf32>
    %109 = arith.divf %107, %108 : vector<8x1xf32>
    %110 = vector.broadcast %109 : vector<8x1xf32> to vector<8x32xf32>
    %111 = arith.subf %103, %110 : vector<8x32xf32>
    %112 = arith.mulf %111, %111 : vector<8x32xf32>
    %cst_46 = arith.constant dense<0.000000e+00> : vector<8xf32>
    %113 = vector.multi_reduction <add>, %112, %cst_46 [1] : vector<8x32xf32> to vector<8xf32>
    %114 = vector.shape_cast %113 : vector<8xf32> to vector<8x1xf32>
    %cst_47 = arith.constant 3.200000e+01 : f32
    %115 = vector.broadcast %cst_47 : f32 to vector<8x1xf32>
    %116 = arith.divf %114, %115 : vector<8x1xf32>
    %117 = vector.broadcast %109 : vector<8x1xf32> to vector<8x32xf32>
    %118 = arith.subf %103, %117 : vector<8x32xf32>
    %cst_48 = arith.constant 9.99999996E-13 : f32
    %119 = vector.broadcast %cst_48 : f32 to vector<8x1xf32>
    %120 = arith.addf %116, %119 : vector<8x1xf32>
    %121 = math.rsqrt %120 : vector<8x1xf32>
    %122 = vector.broadcast %121 : vector<8x1xf32> to vector<8x32xf32>
    %123 = arith.mulf %118, %122 : vector<8x32xf32>
    %124 = vector.broadcast %104 : vector<1x32xf32> to vector<8x32xf32>
    %125 = arith.mulf %123, %124 : vector<8x32xf32>
    %126 = vector.broadcast %105 : vector<1x32xf32> to vector<8x32xf32>
    %127 = arith.addf %125, %126 : vector<8x32xf32>
    %128 = arith.truncf %127 : vector<8x32xf32> to vector<8x32xbf16>
    %cst_49 = arith.constant dense<0.000000e+00> : vector<8x64xf32>
    %129 = tpu.matmul %128, %37, %cst_49 {dimension_numbers = #tpu.dot_dimension_numbers<[1], [0], [0], [1], [0, 0, 1, 1], [], []>} : vector<8x32xbf16>, vector<32x64xbf16>, vector<8x64xf32> -> vector<8x64xf32>
    %c6 = arith.constant 6 : index
    %c0_50 = arith.constant 0 : index
    %130 = vector.load %arg5[%c6, %c0_50] : memref<20x256xf32, #tpu.memory_space<vmem>>, vector<1x64xf32>
    %131 = vector.broadcast %130 : vector<1x64xf32> to vector<8x64xf32>
    %132 = arith.addf %129, %131 : vector<8x64xf32>
    %cst_51 = arith.constant 5.000000e-01 : f32
    %133 = vector.broadcast %cst_51 : f32 to vector<8x64xf32>
    %134 = arith.mulf %133, %132 : vector<8x64xf32>
    %cst_52 = arith.constant 4.471500e-02 : f32
    %135 = vector.broadcast %cst_52 : f32 to vector<8x64xf32>
    %136 = arith.mulf %135, %132 : vector<8x64xf32>
    %137 = arith.mulf %136, %132 : vector<8x64xf32>
    %138 = arith.mulf %137, %132 : vector<8x64xf32>
    %139 = arith.addf %132, %138 : vector<8x64xf32>
    %cst_53 = arith.constant 0.797884583 : f32
    %140 = vector.broadcast %cst_53 : f32 to vector<8x64xf32>
    %141 = arith.mulf %140, %139 : vector<8x64xf32>
    %142 = math.tanh %141 : vector<8x64xf32>
    %cst_54 = arith.constant 1.000000e+00 : f32
    %143 = vector.broadcast %cst_54 : f32 to vector<8x64xf32>
    %144 = arith.addf %143, %142 : vector<8x64xf32>
    %145 = arith.mulf %134, %144 : vector<8x64xf32>
    %146 = arith.truncf %145 : vector<8x64xf32> to vector<8x64xbf16>
    %cst_55 = arith.constant dense<0.000000e+00> : vector<8x32xf32>
    %147 = tpu.matmul %146, %39, %cst_55 {dimension_numbers = #tpu.dot_dimension_numbers<[1], [0], [0], [1], [0, 0, 1, 1], [], []>} : vector<8x64xbf16>, vector<64x32xbf16>, vector<8x32xf32> -> vector<8x32xf32>
    %c7 = arith.constant 7 : index
    %c0_56 = arith.constant 0 : index
    %148 = vector.load %arg5[%c7, %c0_56] : memref<20x256xf32, #tpu.memory_space<vmem>>, vector<1x32xf32>
    %149 = vector.broadcast %148 : vector<1x32xf32> to vector<8x32xf32>
    %150 = arith.addf %147, %149 : vector<8x32xf32>
    %151 = arith.addf %127, %150 : vector<8x32xf32>
    %c8 = arith.constant 8 : index
    %c0_57 = arith.constant 0 : index
    %152 = vector.load %arg5[%c8, %c0_57] : memref<20x256xf32, #tpu.memory_space<vmem>>, vector<1x32xf32>
    %c9 = arith.constant 9 : index
    %c0_58 = arith.constant 0 : index
    %153 = vector.load %arg5[%c9, %c0_58] : memref<20x256xf32, #tpu.memory_space<vmem>>, vector<1x32xf32>
    %cst_59 = arith.constant dense<0.000000e+00> : vector<8xf32>
    %154 = vector.multi_reduction <add>, %151, %cst_59 [1] : vector<8x32xf32> to vector<8xf32>
    %155 = vector.shape_cast %154 : vector<8xf32> to vector<8x1xf32>
    %cst_60 = arith.constant 3.200000e+01 : f32
    %156 = vector.broadcast %cst_60 : f32 to vector<8x1xf32>
    %157 = arith.divf %155, %156 : vector<8x1xf32>
    %158 = vector.broadcast %157 : vector<8x1xf32> to vector<8x32xf32>
    %159 = arith.subf %151, %158 : vector<8x32xf32>
    %160 = arith.mulf %159, %159 : vector<8x32xf32>
    %cst_61 = arith.constant dense<0.000000e+00> : vector<8xf32>
    %161 = vector.multi_reduction <add>, %160, %cst_61 [1] : vector<8x32xf32> to vector<8xf32>
    %162 = vector.shape_cast %161 : vector<8xf32> to vector<8x1xf32>
    %cst_62 = arith.constant 3.200000e+01 : f32
    %163 = vector.broadcast %cst_62 : f32 to vector<8x1xf32>
    %164 = arith.divf %162, %163 : vector<8x1xf32>
    %165 = vector.broadcast %157 : vector<8x1xf32> to vector<8x32xf32>
    %166 = arith.subf %151, %165 : vector<8x32xf32>
    %cst_63 = arith.constant 9.99999996E-13 : f32
    %167 = vector.broadcast %cst_63 : f32 to vector<8x1xf32>
    %168 = arith.addf %164, %167 : vector<8x1xf32>
    %169 = math.rsqrt %168 : vector<8x1xf32>
    %170 = vector.broadcast %169 : vector<8x1xf32> to vector<8x32xf32>
    %171 = arith.mulf %166, %170 : vector<8x32xf32>
    %172 = vector.broadcast %152 : vector<1x32xf32> to vector<8x32xf32>
    %173 = arith.mulf %171, %172 : vector<8x32xf32>
    %174 = vector.broadcast %153 : vector<1x32xf32> to vector<8x32xf32>
    %175 = arith.addf %173, %174 : vector<8x32xf32>
    %c1_64 = arith.constant 1 : index
    %c0_65 = arith.constant 0 : index
    %c0_66 = arith.constant 0 : index
    %176 = vector.load %arg6[%c1_64, %c0_65, %c0_66] : memref<2x32x96xbf16, #tpu.memory_space<vmem>>, vector<1x32x96xbf16>
    %177 = vector.shape_cast %176 : vector<1x32x96xbf16> to vector<32x96xbf16>
    %c1_67 = arith.constant 1 : index
    %c0_68 = arith.constant 0 : index
    %c0_69 = arith.constant 0 : index
    %178 = vector.load %arg7[%c1_67, %c0_68, %c0_69] : memref<2x32x32xbf16, #tpu.memory_space<vmem>>, vector<1x32x32xbf16>
    %179 = vector.shape_cast %178 : vector<1x32x32xbf16> to vector<32x32xbf16>
    %c1_70 = arith.constant 1 : index
    %c0_71 = arith.constant 0 : index
    %c0_72 = arith.constant 0 : index
    %180 = vector.load %arg8[%c1_70, %c0_71, %c0_72] : memref<2x32x64xbf16, #tpu.memory_space<vmem>>, vector<1x32x64xbf16>
    %181 = vector.shape_cast %180 : vector<1x32x64xbf16> to vector<32x64xbf16>
    %c1_73 = arith.constant 1 : index
    %c0_74 = arith.constant 0 : index
    %c0_75 = arith.constant 0 : index
    %182 = vector.load %arg9[%c1_73, %c0_74, %c0_75] : memref<2x64x32xbf16, #tpu.memory_space<vmem>>, vector<1x64x32xbf16>
    %183 = vector.shape_cast %182 : vector<1x64x32xbf16> to vector<64x32xbf16>
    %184 = arith.truncf %175 : vector<8x32xf32> to vector<8x32xbf16>
    %cst_76 = arith.constant dense<0.000000e+00> : vector<8x96xf32>
    %185 = tpu.matmul %184, %177, %cst_76 {dimension_numbers = #tpu.dot_dimension_numbers<[1], [0], [0], [1], [0, 0, 1, 1], [], []>} : vector<8x32xbf16>, vector<32x96xbf16>, vector<8x96xf32> -> vector<8x96xf32>
    %c10 = arith.constant 10 : index
    %c0_77 = arith.constant 0 : index
    %186 = vector.load %arg5[%c10, %c0_77] : memref<20x256xf32, #tpu.memory_space<vmem>>, vector<1x96xf32>
    %187 = vector.broadcast %186 : vector<1x96xf32> to vector<8x96xf32>
    %188 = arith.addf %185, %187 : vector<8x96xf32>
    %cst_78 = arith.constant 0.000000e+00 : f32
    %189 = vector.broadcast %cst_78 : f32 to vector<8x32xf32>
    %190 = vector.extract_strided_slice %188 {offsets = [0, 0], sizes = [8, 16], strides = [1, 1]} : vector<8x96xf32> to vector<8x16xf32>
    %191 = vector.extract_strided_slice %188 {offsets = [0, 32], sizes = [8, 16], strides = [1, 1]} : vector<8x96xf32> to vector<8x16xf32>
    %192 = vector.extract_strided_slice %188 {offsets = [0, 64], sizes = [8, 16], strides = [1, 1]} : vector<8x96xf32> to vector<8x16xf32>
    %193 = arith.truncf %190 : vector<8x16xf32> to vector<8x16xbf16>
    %194 = arith.truncf %191 : vector<8x16xf32> to vector<8x16xbf16>
    %cst_79 = arith.constant dense<0.000000e+00> : vector<8x8xf32>
    %195 = tpu.matmul %193, %194, %cst_79 {dimension_numbers = #tpu.dot_dimension_numbers<[1], [1], [0], [0], [0, 0, 1, 0], [], []>} : vector<8x16xbf16>, vector<8x16xbf16>, vector<8x8xf32> -> vector<8x8xf32>
    %cst_80 = arith.constant 2.500000e-01 : f32
    %196 = vector.broadcast %cst_80 : f32 to vector<8x8xf32>
    %197 = arith.mulf %195, %196 : vector<8x8xf32>
    %198 = vector.broadcast %31 : vector<1x8xf32> to vector<8x8xf32>
    %199 = arith.addf %197, %198 : vector<8x8xf32>
    %cst_81 = arith.constant dense<0xFF800000> : vector<8xf32>
    %200 = vector.multi_reduction <maximumf>, %199, %cst_81 [1] : vector<8x8xf32> to vector<8xf32>
    %201 = vector.shape_cast %200 : vector<8xf32> to vector<8x1xf32>
    %202 = vector.broadcast %201 : vector<8x1xf32> to vector<8x8xf32>
    %203 = arith.subf %199, %202 : vector<8x8xf32>
    %204 = math.exp %203 : vector<8x8xf32>
    %cst_82 = arith.constant dense<0.000000e+00> : vector<8xf32>
    %205 = vector.multi_reduction <add>, %204, %cst_82 [1] : vector<8x8xf32> to vector<8xf32>
    %206 = vector.shape_cast %205 : vector<8xf32> to vector<8x1xf32>
    %207 = tpu.reciprocal %206 {approx = true} : vector<8x1xf32> -> vector<8x1xf32>
    %208 = vector.broadcast %207 : vector<8x1xf32> to vector<8x8xf32>
    %209 = arith.mulf %204, %208 : vector<8x8xf32>
    %210 = arith.truncf %192 : vector<8x16xf32> to vector<8x16xbf16>
    %211 = arith.truncf %209 : vector<8x8xf32> to vector<8x8xbf16>
    %cst_83 = arith.constant dense<0.000000e+00> : vector<8x16xf32>
    %212 = tpu.matmul %211, %210, %cst_83 {dimension_numbers = #tpu.dot_dimension_numbers<[1], [0], [0], [1], [0, 0, 1, 1], [], []>} : vector<8x8xbf16>, vector<8x16xbf16>, vector<8x16xf32> -> vector<8x16xf32>
    %213 = vector.extract_strided_slice %179 {offsets = [0, 0], sizes = [16, 32], strides = [1, 1]} : vector<32x32xbf16> to vector<16x32xbf16>
    %214 = arith.truncf %212 : vector<8x16xf32> to vector<8x16xbf16>
    %cst_84 = arith.constant dense<0.000000e+00> : vector<8x32xf32>
    %215 = tpu.matmul %214, %213, %cst_84 {dimension_numbers = #tpu.dot_dimension_numbers<[1], [0], [0], [1], [0, 0, 1, 1], [], []>} : vector<8x16xbf16>, vector<16x32xbf16>, vector<8x32xf32> -> vector<8x32xf32>
    %216 = arith.addf %189, %215 : vector<8x32xf32>
    %217 = vector.extract_strided_slice %188 {offsets = [0, 16], sizes = [8, 16], strides = [1, 1]} : vector<8x96xf32> to vector<8x16xf32>
    %218 = vector.extract_strided_slice %188 {offsets = [0, 48], sizes = [8, 16], strides = [1, 1]} : vector<8x96xf32> to vector<8x16xf32>
    %219 = vector.extract_strided_slice %188 {offsets = [0, 80], sizes = [8, 16], strides = [1, 1]} : vector<8x96xf32> to vector<8x16xf32>
    %220 = arith.truncf %217 : vector<8x16xf32> to vector<8x16xbf16>
    %221 = arith.truncf %218 : vector<8x16xf32> to vector<8x16xbf16>
    %cst_85 = arith.constant dense<0.000000e+00> : vector<8x8xf32>
    %222 = tpu.matmul %220, %221, %cst_85 {dimension_numbers = #tpu.dot_dimension_numbers<[1], [1], [0], [0], [0, 0, 1, 0], [], []>} : vector<8x16xbf16>, vector<8x16xbf16>, vector<8x8xf32> -> vector<8x8xf32>
    %cst_86 = arith.constant 2.500000e-01 : f32
    %223 = vector.broadcast %cst_86 : f32 to vector<8x8xf32>
    %224 = arith.mulf %222, %223 : vector<8x8xf32>
    %225 = vector.broadcast %31 : vector<1x8xf32> to vector<8x8xf32>
    %226 = arith.addf %224, %225 : vector<8x8xf32>
    %cst_87 = arith.constant dense<0xFF800000> : vector<8xf32>
    %227 = vector.multi_reduction <maximumf>, %226, %cst_87 [1] : vector<8x8xf32> to vector<8xf32>
    %228 = vector.shape_cast %227 : vector<8xf32> to vector<8x1xf32>
    %229 = vector.broadcast %228 : vector<8x1xf32> to vector<8x8xf32>
    %230 = arith.subf %226, %229 : vector<8x8xf32>
    %231 = math.exp %230 : vector<8x8xf32>
    %cst_88 = arith.constant dense<0.000000e+00> : vector<8xf32>
    %232 = vector.multi_reduction <add>, %231, %cst_88 [1] : vector<8x8xf32> to vector<8xf32>
    %233 = vector.shape_cast %232 : vector<8xf32> to vector<8x1xf32>
    %234 = tpu.reciprocal %233 {approx = true} : vector<8x1xf32> -> vector<8x1xf32>
    %235 = vector.broadcast %234 : vector<8x1xf32> to vector<8x8xf32>
    %236 = arith.mulf %231, %235 : vector<8x8xf32>
    %237 = arith.truncf %219 : vector<8x16xf32> to vector<8x16xbf16>
    %238 = arith.truncf %236 : vector<8x8xf32> to vector<8x8xbf16>
    %cst_89 = arith.constant dense<0.000000e+00> : vector<8x16xf32>
    %239 = tpu.matmul %238, %237, %cst_89 {dimension_numbers = #tpu.dot_dimension_numbers<[1], [0], [0], [1], [0, 0, 1, 1], [], []>} : vector<8x8xbf16>, vector<8x16xbf16>, vector<8x16xf32> -> vector<8x16xf32>
    %240 = vector.extract_strided_slice %179 {offsets = [16, 0], sizes = [16, 32], strides = [1, 1]} : vector<32x32xbf16> to vector<16x32xbf16>
    %241 = arith.truncf %239 : vector<8x16xf32> to vector<8x16xbf16>
    %cst_90 = arith.constant dense<0.000000e+00> : vector<8x32xf32>
    %242 = tpu.matmul %241, %240, %cst_90 {dimension_numbers = #tpu.dot_dimension_numbers<[1], [0], [0], [1], [0, 0, 1, 1], [], []>} : vector<8x16xbf16>, vector<16x32xbf16>, vector<8x32xf32> -> vector<8x32xf32>
    %243 = arith.addf %216, %242 : vector<8x32xf32>
    %c11 = arith.constant 11 : index
    %c0_91 = arith.constant 0 : index
    %244 = vector.load %arg5[%c11, %c0_91] : memref<20x256xf32, #tpu.memory_space<vmem>>, vector<1x32xf32>
    %245 = vector.broadcast %244 : vector<1x32xf32> to vector<8x32xf32>
    %246 = arith.addf %243, %245 : vector<8x32xf32>
    %247 = arith.addf %175, %246 : vector<8x32xf32>
    %c12 = arith.constant 12 : index
    %c0_92 = arith.constant 0 : index
    %248 = vector.load %arg5[%c12, %c0_92] : memref<20x256xf32, #tpu.memory_space<vmem>>, vector<1x32xf32>
    %c13 = arith.constant 13 : index
    %c0_93 = arith.constant 0 : index
    %249 = vector.load %arg5[%c13, %c0_93] : memref<20x256xf32, #tpu.memory_space<vmem>>, vector<1x32xf32>
    %cst_94 = arith.constant dense<0.000000e+00> : vector<8xf32>
    %250 = vector.multi_reduction <add>, %247, %cst_94 [1] : vector<8x32xf32> to vector<8xf32>
    %251 = vector.shape_cast %250 : vector<8xf32> to vector<8x1xf32>
    %cst_95 = arith.constant 3.200000e+01 : f32
    %252 = vector.broadcast %cst_95 : f32 to vector<8x1xf32>
    %253 = arith.divf %251, %252 : vector<8x1xf32>
    %254 = vector.broadcast %253 : vector<8x1xf32> to vector<8x32xf32>
    %255 = arith.subf %247, %254 : vector<8x32xf32>
    %256 = arith.mulf %255, %255 : vector<8x32xf32>
    %cst_96 = arith.constant dense<0.000000e+00> : vector<8xf32>
    %257 = vector.multi_reduction <add>, %256, %cst_96 [1] : vector<8x32xf32> to vector<8xf32>
    %258 = vector.shape_cast %257 : vector<8xf32> to vector<8x1xf32>
    %cst_97 = arith.constant 3.200000e+01 : f32
    %259 = vector.broadcast %cst_97 : f32 to vector<8x1xf32>
    %260 = arith.divf %258, %259 : vector<8x1xf32>
    %261 = vector.broadcast %253 : vector<8x1xf32> to vector<8x32xf32>
    %262 = arith.subf %247, %261 : vector<8x32xf32>
    %cst_98 = arith.constant 9.99999996E-13 : f32
    %263 = vector.broadcast %cst_98 : f32 to vector<8x1xf32>
    %264 = arith.addf %260, %263 : vector<8x1xf32>
    %265 = math.rsqrt %264 : vector<8x1xf32>
    %266 = vector.broadcast %265 : vector<8x1xf32> to vector<8x32xf32>
    %267 = arith.mulf %262, %266 : vector<8x32xf32>
    %268 = vector.broadcast %248 : vector<1x32xf32> to vector<8x32xf32>
    %269 = arith.mulf %267, %268 : vector<8x32xf32>
    %270 = vector.broadcast %249 : vector<1x32xf32> to vector<8x32xf32>
    %271 = arith.addf %269, %270 : vector<8x32xf32>
    %272 = arith.truncf %271 : vector<8x32xf32> to vector<8x32xbf16>
    %cst_99 = arith.constant dense<0.000000e+00> : vector<8x64xf32>
    %273 = tpu.matmul %272, %181, %cst_99 {dimension_numbers = #tpu.dot_dimension_numbers<[1], [0], [0], [1], [0, 0, 1, 1], [], []>} : vector<8x32xbf16>, vector<32x64xbf16>, vector<8x64xf32> -> vector<8x64xf32>
    %c14 = arith.constant 14 : index
    %c0_100 = arith.constant 0 : index
    %274 = vector.load %arg5[%c14, %c0_100] : memref<20x256xf32, #tpu.memory_space<vmem>>, vector<1x64xf32>
    %275 = vector.broadcast %274 : vector<1x64xf32> to vector<8x64xf32>
    %276 = arith.addf %273, %275 : vector<8x64xf32>
    %cst_101 = arith.constant 5.000000e-01 : f32
    %277 = vector.broadcast %cst_101 : f32 to vector<8x64xf32>
    %278 = arith.mulf %277, %276 : vector<8x64xf32>
    %cst_102 = arith.constant 4.471500e-02 : f32
    %279 = vector.broadcast %cst_102 : f32 to vector<8x64xf32>
    %280 = arith.mulf %279, %276 : vector<8x64xf32>
    %281 = arith.mulf %280, %276 : vector<8x64xf32>
    %282 = arith.mulf %281, %276 : vector<8x64xf32>
    %283 = arith.addf %276, %282 : vector<8x64xf32>
    %cst_103 = arith.constant 0.797884583 : f32
    %284 = vector.broadcast %cst_103 : f32 to vector<8x64xf32>
    %285 = arith.mulf %284, %283 : vector<8x64xf32>
    %286 = math.tanh %285 : vector<8x64xf32>
    %cst_104 = arith.constant 1.000000e+00 : f32
    %287 = vector.broadcast %cst_104 : f32 to vector<8x64xf32>
    %288 = arith.addf %287, %286 : vector<8x64xf32>
    %289 = arith.mulf %278, %288 : vector<8x64xf32>
    %290 = arith.truncf %289 : vector<8x64xf32> to vector<8x64xbf16>
    %cst_105 = arith.constant dense<0.000000e+00> : vector<8x32xf32>
    %291 = tpu.matmul %290, %183, %cst_105 {dimension_numbers = #tpu.dot_dimension_numbers<[1], [0], [0], [1], [0, 0, 1, 1], [], []>} : vector<8x64xbf16>, vector<64x32xbf16>, vector<8x32xf32> -> vector<8x32xf32>
    %c15 = arith.constant 15 : index
    %c0_106 = arith.constant 0 : index
    %292 = vector.load %arg5[%c15, %c0_106] : memref<20x256xf32, #tpu.memory_space<vmem>>, vector<1x32xf32>
    %293 = vector.broadcast %292 : vector<1x32xf32> to vector<8x32xf32>
    %294 = arith.addf %291, %293 : vector<8x32xf32>
    %295 = arith.addf %271, %294 : vector<8x32xf32>
    %c16 = arith.constant 16 : index
    %c0_107 = arith.constant 0 : index
    %296 = vector.load %arg5[%c16, %c0_107] : memref<20x256xf32, #tpu.memory_space<vmem>>, vector<1x32xf32>
    %c17 = arith.constant 17 : index
    %c0_108 = arith.constant 0 : index
    %297 = vector.load %arg5[%c17, %c0_108] : memref<20x256xf32, #tpu.memory_space<vmem>>, vector<1x32xf32>
    %cst_109 = arith.constant dense<0.000000e+00> : vector<8xf32>
    %298 = vector.multi_reduction <add>, %295, %cst_109 [1] : vector<8x32xf32> to vector<8xf32>
    %299 = vector.shape_cast %298 : vector<8xf32> to vector<8x1xf32>
    %cst_110 = arith.constant 3.200000e+01 : f32
    %300 = vector.broadcast %cst_110 : f32 to vector<8x1xf32>
    %301 = arith.divf %299, %300 : vector<8x1xf32>
    %302 = vector.broadcast %301 : vector<8x1xf32> to vector<8x32xf32>
    %303 = arith.subf %295, %302 : vector<8x32xf32>
    %304 = arith.mulf %303, %303 : vector<8x32xf32>
    %cst_111 = arith.constant dense<0.000000e+00> : vector<8xf32>
    %305 = vector.multi_reduction <add>, %304, %cst_111 [1] : vector<8x32xf32> to vector<8xf32>
    %306 = vector.shape_cast %305 : vector<8xf32> to vector<8x1xf32>
    %cst_112 = arith.constant 3.200000e+01 : f32
    %307 = vector.broadcast %cst_112 : f32 to vector<8x1xf32>
    %308 = arith.divf %306, %307 : vector<8x1xf32>
    %309 = vector.broadcast %301 : vector<8x1xf32> to vector<8x32xf32>
    %310 = arith.subf %295, %309 : vector<8x32xf32>
    %cst_113 = arith.constant 9.99999996E-13 : f32
    %311 = vector.broadcast %cst_113 : f32 to vector<8x1xf32>
    %312 = arith.addf %308, %311 : vector<8x1xf32>
    %313 = math.rsqrt %312 : vector<8x1xf32>
    %314 = vector.broadcast %313 : vector<8x1xf32> to vector<8x32xf32>
    %315 = arith.mulf %310, %314 : vector<8x32xf32>
    %316 = vector.broadcast %296 : vector<1x32xf32> to vector<8x32xf32>
    %317 = arith.mulf %315, %316 : vector<8x32xf32>
    %318 = vector.broadcast %297 : vector<1x32xf32> to vector<8x32xf32>
    %319 = arith.addf %317, %318 : vector<8x32xf32>
    %320 = vector.extract_strided_slice %319 {offsets = [0, 0], sizes = [1, 32], strides = [1, 1]} : vector<8x32xf32> to vector<1x32xf32>
    %c0_114 = arith.constant 0 : index
    %c0_115 = arith.constant 0 : index
    %321 = vector.load %arg10[%c0_114, %c0_115] : memref<32x256xbf16, #tpu.memory_space<vmem>>, vector<32x256xbf16>
    %322 = arith.truncf %320 : vector<1x32xf32> to vector<1x32xbf16>
    %cst_116 = arith.constant dense<0.000000e+00> : vector<1x256xf32>
    %323 = tpu.matmul %322, %321, %cst_116 {dimension_numbers = #tpu.dot_dimension_numbers<[1], [0], [0], [1], [0, 0, 1, 1], [], []>} : vector<1x32xbf16>, vector<32x256xbf16>, vector<1x256xf32> -> vector<1x256xf32>
    %c0_117 = arith.constant 0 : index
    %c0_118 = arith.constant 0 : index
    %c0_119 = arith.constant 0 : index
    %324 = vector.load %arg3[%c0_117, %c0_118, %c0_119] : memref<1x1x4xf32, #tpu.memory_space<vmem>>, vector<1x1x4xf32>
    %325 = vector.shape_cast %324 : vector<1x1x4xf32> to vector<1x4xf32>
    %c0_120 = arith.constant 0 : index
    %c0_121 = arith.constant 0 : index
    %326 = vector.load %arg11[%c0_120, %c0_121] : memref<4x256xbf16, #tpu.memory_space<vmem>>, vector<4x256xbf16>
    %327 = arith.truncf %325 : vector<1x4xf32> to vector<1x4xbf16>
    %cst_122 = arith.constant dense<0.000000e+00> : vector<1x256xf32>
    %328 = tpu.matmul %327, %326, %cst_122 {dimension_numbers = #tpu.dot_dimension_numbers<[1], [0], [0], [1], [0, 0, 1, 1], [], []>} : vector<1x4xbf16>, vector<4x256xbf16>, vector<1x256xf32> -> vector<1x256xf32>
    %329 = arith.addf %323, %328 : vector<1x256xf32>
    %c18 = arith.constant 18 : index
    %c0_123 = arith.constant 0 : index
    %330 = vector.load %arg5[%c18, %c0_123] : memref<20x256xf32, #tpu.memory_space<vmem>>, vector<1x256xf32>
    %331 = arith.addf %329, %330 : vector<1x256xf32>
    %cst_124 = arith.constant 0.000000e+00 : f32
    %332 = vector.broadcast %cst_124 : f32 to vector<1x256xf32>
    %333 = arith.maximumf %331, %332 : vector<1x256xf32>
    %c0_125 = arith.constant 0 : index
    %c0_126 = arith.constant 0 : index
    %334 = vector.load %arg12[%c0_125, %c0_126] : memref<256x3xbf16, #tpu.memory_space<vmem>>, vector<256x3xbf16>
    %335 = arith.truncf %333 : vector<1x256xf32> to vector<1x256xbf16>
    %cst_127 = arith.constant dense<0.000000e+00> : vector<1x3xf32>
    %336 = tpu.matmul %335, %334, %cst_127 {dimension_numbers = #tpu.dot_dimension_numbers<[1], [0], [0], [1], [0, 0, 1, 1], [], []>} : vector<1x256xbf16>, vector<256x3xbf16>, vector<1x3xf32> -> vector<1x3xf32>
    %c19 = arith.constant 19 : index
    %c0_128 = arith.constant 0 : index
    %337 = vector.load %arg5[%c19, %c0_128] : memref<20x256xf32, #tpu.memory_space<vmem>>, vector<1x3xf32>
    %338 = arith.addf %336, %337 : vector<1x3xf32>
    %c0_129 = arith.constant 0 : index
    %c0_130 = arith.constant 0 : index
    %c0_131 = arith.constant 0 : index
    %339 = vector.load %arg13[%c0_129, %c0_130, %c0_131] : memref<1x1x3xf32, #tpu.memory_space<vmem>>, vector<1x1x3xf32>
    %340 = vector.shape_cast %339 : vector<1x1x3xf32> to vector<1x3xf32>
    %341 = vector.shape_cast %338 : vector<1x3xf32> to vector<1x1x3xf32>
    tpu.vector_store %arg13[%c0_129, %c0_130, %c0_131], %341 {strides = array<i32>} : memref<1x1x3xf32, #tpu.memory_space<vmem>>, vector<1x1x3xf32>,
    %c0_132 = arith.constant 0 : index
    %c0_133 = arith.constant 0 : index
    %c0_134 = arith.constant 0 : index
    %342 = vector.load %arg4[%c0_132, %c0_133, %c0_134] : memref<1x1x1xi32, #tpu.memory_space<vmem>>, vector<1x1x1xi32>
    %343 = vector.shape_cast %342 : vector<1x1x1xi32> to vector<1x1xi32>
    %cst_135 = arith.constant dense<0xFF800000> : vector<1xf32>
    %344 = vector.multi_reduction <maximumf>, %338, %cst_135 [1] : vector<1x3xf32> to vector<1xf32>
    %345 = vector.shape_cast %344 : vector<1xf32> to vector<1x1xf32>
    %346 = vector.broadcast %345 : vector<1x1xf32> to vector<1x3xf32>
    %347 = arith.subf %338, %346 : vector<1x3xf32>
    %348 = math.exp %347 : vector<1x3xf32>
    %cst_136 = arith.constant dense<0.000000e+00> : vector<1xf32>
    %349 = vector.multi_reduction <add>, %348, %cst_136 [1] : vector<1x3xf32> to vector<1xf32>
    %350 = vector.shape_cast %349 : vector<1xf32> to vector<1x1xf32>
    %351 = math.log %350 : vector<1x1xf32>
    %352 = arith.addf %351, %345 : vector<1x1xf32>
    %353 = tpu.iota {dimensions = array<i32: 1>} : vector<1x3xi32>
    %354 = vector.broadcast %343 : vector<1x1xi32> to vector<1x3xi32>
    %355 = arith.cmpi eq, %353, %354 : vector<1x3xi32>
    %cst_137 = arith.constant 0.000000e+00 : f32
    %356 = vector.broadcast %cst_137 : f32 to vector<1x3xf32>
    %357 = arith.select %355, %338, %356 : vector<1x3xi1>, vector<1x3xf32>
    %cst_138 = arith.constant dense<0.000000e+00> : vector<1xf32>
    %358 = vector.multi_reduction <add>, %357, %cst_138 [1] : vector<1x3xf32> to vector<1xf32>
    %359 = vector.shape_cast %358 : vector<1xf32> to vector<1x1xf32>
    %360 = arith.subf %352, %359 : vector<1x1xf32>
    %c0_139 = arith.constant 0 : index
    %c0_140 = arith.constant 0 : index
    %c0_141 = arith.constant 0 : index
    %361 = vector.load %arg14[%c0_139, %c0_140, %c0_141] : memref<1x1x1xf32, #tpu.memory_space<vmem>>, vector<1x1x1xf32>
    %362 = vector.shape_cast %361 : vector<1x1x1xf32> to vector<1x1xf32>
    %363 = vector.shape_cast %360 : vector<1x1xf32> to vector<1x1x1xf32>
    tpu.vector_store %arg14[%c0_139, %c0_140, %c0_141], %363 {strides = array<i32>} : memref<1x1x1xf32, #tpu.memory_space<vmem>>, vector<1x1x1xf32>,
    return
  }
  func.func @transform_0(%arg0: i32) -> (i32, i32, i32) {
    %c0_i32 = arith.constant 0 : i32
    %c0_i32_0 = arith.constant 0 : i32
    %c0_i32_1 = arith.constant 0 : i32
    return %arg0, %c0_i32, %c0_i32_0 : i32, i32, i32
  }
  func.func @transform_1(%arg0: i32) -> (i32, i32, i32) {
    %c0_i32 = arith.constant 0 : i32
    %c0_i32_0 = arith.constant 0 : i32
    %c0_i32_1 = arith.constant 0 : i32
    return %arg0, %c0_i32, %c0_i32_0 : i32, i32, i32
  }
  func.func @transform_2(%arg0: i32) -> (i32, i32, i32) {
    %c0_i32 = arith.constant 0 : i32
    %c0_i32_0 = arith.constant 0 : i32
    %c0_i32_1 = arith.constant 0 : i32
    return %arg0, %c0_i32, %c0_i32_0 : i32, i32, i32
  }
  func.func @transform_3(%arg0: i32) -> (i32, i32, i32) {
    %c0_i32 = arith.constant 0 : i32
    %c0_i32_0 = arith.constant 0 : i32
    %c0_i32_1 = arith.constant 0 : i32
    return %arg0, %c0_i32, %c0_i32_0 : i32, i32, i32
  }
  func.func @transform_4(%arg0: i32) -> (i32, i32) {
    %c0_i32 = arith.constant 0 : i32
    %c0_i32_0 = arith.constant 0 : i32
    %c0_i32_1 = arith.constant 0 : i32
    return %c0_i32, %c0_i32_0 : i32, i32
  }
  func.func @transform_5(%arg0: i32) -> (i32, i32, i32) {
    %c0_i32 = arith.constant 0 : i32
    %c0_i32_0 = arith.constant 0 : i32
    %c0_i32_1 = arith.constant 0 : i32
    %c0_i32_2 = arith.constant 0 : i32
    return %c0_i32, %c0_i32_0, %c0_i32_1 : i32, i32, i32
  }
  func.func @transform_6(%arg0: i32) -> (i32, i32, i32) {
    %c0_i32 = arith.constant 0 : i32
    %c0_i32_0 = arith.constant 0 : i32
    %c0_i32_1 = arith.constant 0 : i32
    %c0_i32_2 = arith.constant 0 : i32
    return %c0_i32, %c0_i32_0, %c0_i32_1 : i32, i32, i32
  }
  func.func @transform_7(%arg0: i32) -> (i32, i32, i32) {
    %c0_i32 = arith.constant 0 : i32
    %c0_i32_0 = arith.constant 0 : i32
    %c0_i32_1 = arith.constant 0 : i32
    %c0_i32_2 = arith.constant 0 : i32
    return %c0_i32, %c0_i32_0, %c0_i32_1 : i32, i32, i32
  }
  func.func @transform_8(%arg0: i32) -> (i32, i32, i32) {
    %c0_i32 = arith.constant 0 : i32
    %c0_i32_0 = arith.constant 0 : i32
    %c0_i32_1 = arith.constant 0 : i32
    %c0_i32_2 = arith.constant 0 : i32
    return %c0_i32, %c0_i32_0, %c0_i32_1 : i32, i32, i32
  }
  func.func @transform_9(%arg0: i32) -> (i32, i32) {
    %c0_i32 = arith.constant 0 : i32
    %c0_i32_0 = arith.constant 0 : i32
    %c0_i32_1 = arith.constant 0 : i32
    return %c0_i32, %c0_i32_0 : i32, i32
  }
  func.func @transform_10(%arg0: i32) -> (i32, i32) {
    %c0_i32 = arith.constant 0 : i32
    %c0_i32_0 = arith.constant 0 : i32
    %c0_i32_1 = arith.constant 0 : i32
    return %c0_i32, %c0_i32_0 : i32, i32
  }
  func.func @transform_11(%arg0: i32) -> (i32, i32) {
    %c0_i32 = arith.constant 0 : i32
    %c0_i32_0 = arith.constant 0 : i32
    %c0_i32_1 = arith.constant 0 : i32
    return %c0_i32, %c0_i32_0 : i32, i32
  }
  func.func @transform_12(%arg0: i32) -> (i32, i32, i32) {
    %c0_i32 = arith.constant 0 : i32
    %c0_i32_0 = arith.constant 0 : i32
    %c0_i32_1 = arith.constant 0 : i32
    return %arg0, %c0_i32, %c0_i32_0 : i32, i32, i32
  }
  func.func @transform_13(%arg0: i32) -> (i32, i32, i32) {
    %c0_i32 = arith.constant 0 : i32
    %c0_i32_0 = arith.constant 0 : i32
    %c0_i32_1 = arith.constant 0 : i32
    return %arg0, %c0_i32, %c0_i32_0 : i32, i32, i32
  }
}

</mosaic_0001>

<llo_original>
// kernel: hybrid_bert_forward.1
$region0: #{hybrid_bert_forward.1}
  #allocation0 [shape = 'u32[]', space=smem, size = 0x4, offset = 0x4, fixed_abs, tag = 'smem constant byte address 0x4 - core index']
  #allocation1 [shape = 'u32[144,128]{1,0:T(1,128)}', space=vmem, size = 0x12000, scoped, tag = 'internal scratch']
  %s0 = inlined_call_operand.vmem [shape: f32[2,8,32], index: 0, kind: input, shape index: {}]
  %s1 = inlined_call_operand.vmem [shape: f32[2,1,8], index: 1, kind: input, shape index: {}]
  %s2 = inlined_call_operand.vmem [shape: f32[2,1,4], index: 2, kind: input, shape index: {}]
  %s3 = inlined_call_operand.vmem [shape: s32[2,1,1], index: 3, kind: input, shape index: {}]
  %s4 = inlined_call_operand.vmem [shape: f32[20,256], index: 4, kind: input, shape index: {}]
  %s5 = inlined_call_operand.vmem [shape: bf16[2,32,96], index: 5, kind: input, shape index: {}]
  %s6 = inlined_call_operand.vmem [shape: bf16[2,32,32], index: 6, kind: input, shape index: {}]
  %s7 = inlined_call_operand.vmem [shape: bf16[2,32,64], index: 7, kind: input, shape index: {}]
  %s8 = inlined_call_operand.vmem [shape: bf16[2,64,32], index: 8, kind: input, shape index: {}]
  %s9 = inlined_call_operand.vmem [shape: bf16[32,256], index: 9, kind: input, shape index: {}]
  %s10 = inlined_call_operand.vmem [shape: bf16[4,256], index: 10, kind: input, shape index: {}]
  %s11 = inlined_call_operand.vmem [shape: bf16[256,3], index: 11, kind: input, shape index: {}]
  %s12 = inlined_call_operand.hbm [shape: f32[2,1,3], index: 12, kind: output, shape index: {0}]
  %s13 = inlined_call_operand.vmem [shape: f32[2,1,1], index: 13, kind: output, shape index: {1}]
  %14 = xla_tuple %s12, %s13
  %s15 = sld [smem:[#allocation0]]
  $region89: #{hybrid_bert_forward.1} parent=0
    _
  %s17 = ssub.s32 1, %s15
  %s18 = scalar_select 0, %s17, %s15
  $region1: #{hybrid_bert_forward.1} parent=0
    #allocation2 [shape = 'u8[1024]{0}', space=vmem, size = 0x400, scoped, tag = 'output window, operand 0']
    #allocation3 [shape = 's32[2]{0}', space=sflag, size = 0x8, scoped, tag = 'scoped memory for hybrid_bert_forward.1']
    %19 = vsyncpa [#allocation3], 0
    %s20 = scalar_lea.sflag [#allocation3], 1
    %21 = vsyncpa %s20, 0
    loop: start=0, step=1, limit=4
    $region2: #{hybrid_bert_forward.1} parent=1 // loop_pre_header
      _
    $region3: #{hybrid_bert_forward.1} parent=1 // loop_header
      %s23 = sphi 0, %s27
      %p24 = scmp.ge.s32.totalorder %s23, 4
      %s33 = sphi 0, %s35
      %s36 = sphi 0, %s33
      %s37 = sphi 0, %s36
      %s53 = sphi 0, %s37
      %s59 = sphi 0, %s61
      %s62 = sphi 0, %s59
      %s63 = sphi 0, %s62
      %s79 = sphi 0, %s63
      %s85 = sphi 0, %s87
      %s88 = sphi 0, %s85
      %s89 = sphi 0, %s88
      %s105 = sphi 0, %s89
      %s111 = sphi 0, %s113
      %s114 = sphi 0, %s111
      %s115 = sphi 0, %s114
      %s131 = sphi 0, %s115
      %s135 = sphi 0, %s135
      %s137 = sphi 0, %s135
      %s138 = sphi 0, %s137
      %s152 = sphi 0, %s138
      %s156 = sphi 0, %s156
      %s158 = sphi 0, %s156
      %s159 = sphi 0, %s158
      %s173 = sphi 0, %s159
      %s177 = sphi 0, %s177
      %s179 = sphi 0, %s177
      %s180 = sphi 0, %s179
      %s194 = sphi 0, %s180
      %s198 = sphi 0, %s198
      %s200 = sphi 0, %s198
      %s201 = sphi 0, %s200
      %s215 = sphi 0, %s201
      %s219 = sphi 0, %s219
      %s221 = sphi 0, %s219
      %s222 = sphi 0, %s221
      %s236 = sphi 0, %s222
      %s240 = sphi 0, %s240
      %s242 = sphi 0, %s240
      %s243 = sphi 0, %s242
      %s257 = sphi 0, %s243
      %s261 = sphi 0, %s261
      %s263 = sphi 0, %s261
      %s264 = sphi 0, %s263
      %s278 = sphi 0, %s264
      %s282 = sphi 0, %s282
      %s284 = sphi 0, %s282
      %s285 = sphi 0, %s284
      %s299 = sphi 0, %s285
      %s305 = sphi 0, %s307
      %s308 = sphi 0, %s305
      %s309 = sphi 0, %s308
      %s325 = sphi 0, %s309
      %s331 = sphi 0, %s333
      %s334 = sphi 0, %s331
      %s335 = sphi 0, %s334
      %s351 = sphi 0, %s335
    $region4: #{hybrid_bert_forward.1} parent=1 // loop_header_branch
      %26 = sbr.rel (%p24) target = $region8
    $region5: #{hybrid_bert_forward.1} parent=1 // loop_body
      %s28 = ssub.s32 %s23, 1
      %s29 = ssub.s32 %s23, 2
      %s30 = sadd.s32 %s23, 1
      %s31 = ssub.s32 %s23, %s30
      %p32 = scmp.eq.s32.totalorder %s31, 0
      %s34 = sadd.s32 %s33, 1
      %s35 = scalar_select %p32, %s33, %s34
      %p38 = pneg %p32
      %p39 = scmp.eq.s32.totalorder %s23, 1
      %p40 = por %p38, %p39
      %p41 = scmp.ne.s32.totalorder %s33, %s36
      %p42 = scmp.eq.s32.totalorder %s23, 0
      %p43 = por %p41, %p42
      %p44 = scmp.ne.s32.totalorder %s33, %s36
      %p45 = scmp.eq.s32.totalorder %s28, 1
      %p46 = por %p44, %p45
      %p47 = scmp.ne.s32.totalorder %s36, %s37
      %p48 = scmp.eq.s32.totalorder %s28, 0
      %p49 = por %p47, %p48
      %p50 = scmp.ne.s32.totalorder %s36, %s37
      %p51 = scmp.eq.s32.totalorder %s29, 1
      %p52 = por %p50, %p51
      %p54 = scmp.ne.s32.totalorder %s37, %s53
      %p55 = scmp.eq.s32.totalorder %s29, 0
      %p56 = por %p54, %p55
      %s57 = ssub.s32 %s23, %s30
      %p58 = scmp.eq.s32.totalorder %s57, 0
      %s60 = sadd.s32 %s59, 1
      %s61 = scalar_select %p58, %s59, %s60
      %p64 = pneg %p58
      %p65 = scmp.eq.s32.totalorder %s23, 1
      %p66 = por %p64, %p65
      %p67 = scmp.ne.s32.totalorder %s59, %s62
      %p68 = scmp.eq.s32.totalorder %s23, 0
      %p69 = por %p67, %p68
      %p70 = scmp.ne.s32.totalorder %s59, %s62
      %p71 = scmp.eq.s32.totalorder %s28, 1
      %p72 = por %p70, %p71
      %p73 = scmp.ne.s32.totalorder %s62, %s63
      %p74 = scmp.eq.s32.totalorder %s28, 0
      %p75 = por %p73, %p74
      %p76 = scmp.ne.s32.totalorder %s62, %s63
      %p77 = scmp.eq.s32.totalorder %s29, 1
      %p78 = por %p76, %p77
      %p80 = scmp.ne.s32.totalorder %s63, %s79
      %p81 = scmp.eq.s32.totalorder %s29, 0
      %p82 = por %p80, %p81
      %s83 = ssub.s32 %s23, %s30
      %p84 = scmp.eq.s32.totalorder %s83, 0
      %s86 = sadd.s32 %s85, 1
      %s87 = scalar_select %p84, %s85, %s86
      %p90 = pneg %p84
      %p91 = scmp.eq.s32.totalorder %s23, 1
      %p92 = por %p90, %p91
      %p93 = scmp.ne.s32.totalorder %s85, %s88
      %p94 = scmp.eq.s32.totalorder %s23, 0
      %p95 = por %p93, %p94
      %p96 = scmp.ne.s32.totalorder %s85, %s88
      %p97 = scmp.eq.s32.totalorder %s28, 1
      %p98 = por %p96, %p97
      %p99 = scmp.ne.s32.totalorder %s88, %s89
      %p100 = scmp.eq.s32.totalorder %s28, 0
      %p101 = por %p99, %p100
      %p102 = scmp.ne.s32.totalorder %s88, %s89
      %p103 = scmp.eq.s32.totalorder %s29, 1
      %p104 = por %p102, %p103
      %p106 = scmp.ne.s32.totalorder %s89, %s105
      %p107 = scmp.eq.s32.totalorder %s29, 0
      %p108 = por %p106, %p107
      %s109 = ssub.s32 %s23, %s30
      %p110 = scmp.eq.s32.totalorder %s109, 0
      %s112 = sadd.s32 %s111, 1
      %s113 = scalar_select %p110, %s111, %s112
      %p116 = pneg %p110
      %p117 = scmp.eq.s32.totalorder %s23, 1
      %p118 = por %p116, %p117
      %p119 = scmp.ne.s32.totalorder %s111, %s114
      %p120 = scmp.eq.s32.totalorder %s23, 0
      %p121 = por %p119, %p120
      %p122 = scmp.ne.s32.totalorder %s111, %s114
      %p123 = scmp.eq.s32.totalorder %s28, 1
      %p124 = por %p122, %p123
      %p125 = scmp.ne.s32.totalorder %s114, %s115
      %p126 = scmp.eq.s32.totalorder %s28, 0
      %p127 = por %p125, %p126
      %p128 = scmp.ne.s32.totalorder %s114, %s115
      %p129 = scmp.eq.s32.totalorder %s29, 1
      %p130 = por %p128, %p129
      %p132 = scmp.ne.s32.totalorder %s115, %s131
      %p133 = scmp.eq.s32.totalorder %s29, 0
      %p134 = por %p132, %p133
      %s136 = sadd.s32 %s135, 1
      %p139 = scmp.eq.s32.totalorder %s23, 1
      %p140 = scmp.ne.s32.totalorder %s135, %s137
      %p141 = scmp.eq.s32.totalorder %s23, 0
      %p142 = por %p140, %p141
      %p143 = scmp.ne.s32.totalorder %s135, %s137
      %p144 = scmp.eq.s32.totalorder %s28, 1
      %p145 = por %p143, %p144
      %p146 = scmp.ne.s32.totalorder %s137, %s138
      %p147 = scmp.eq.s32.totalorder %s28, 0
      %p148 = por %p146, %p147
      %p149 = scmp.ne.s32.totalorder %s137, %s138
      %p150 = scmp.eq.s32.totalorder %s29, 1
      %p151 = por %p149, %p150
      %p153 = scmp.ne.s32.totalorder %s138, %s152
      %p154 = scmp.eq.s32.totalorder %s29, 0
      %p155 = por %p153, %p154
      %s157 = sadd.s32 %s156, 1
      %p160 = scmp.eq.s32.totalorder %s23, 1
      %p161 = scmp.ne.s32.totalorder %s156, %s158
      %p162 = scmp.eq.s32.totalorder %s23, 0
      %p163 = por %p161, %p162
      %p164 = scmp.ne.s32.totalorder %s156, %s158
      %p165 = scmp.eq.s32.totalorder %s28, 1
      %p166 = por %p164, %p165
      %p167 = scmp.ne.s32.totalorder %s158, %s159
      %p168 = scmp.eq.s32.totalorder %s28, 0
      %p169 = por %p167, %p168
      %p170 = scmp.ne.s32.totalorder %s158, %s159
      %p171 = scmp.eq.s32.totalorder %s29, 1
      %p172 = por %p170, %p171
      %p174 = scmp.ne.s32.totalorder %s159, %s173
      %p175 = scmp.eq.s32.totalorder %s29, 0
      %p176 = por %p174, %p175
      %s178 = sadd.s32 %s177, 1
      %p181 = scmp.eq.s32.totalorder %s23, 1
      %p182 = scmp.ne.s32.totalorder %s177, %s179
      %p183 = scmp.eq.s32.totalorder %s23, 0
      %p184 = por %p182, %p183
      %p185 = scmp.ne.s32.totalorder %s177, %s179
      %p186 = scmp.eq.s32.totalorder %s28, 1
      %p187 = por %p185, %p186
      %p188 = scmp.ne.s32.totalorder %s179, %s180
      %p189 = scmp.eq.s32.totalorder %s28, 0
      %p190 = por %p188, %p189
      %p191 = scmp.ne.s32.totalorder %s179, %s180
      %p192 = scmp.eq.s32.totalorder %s29, 1
      %p193 = por %p191, %p192
      %p195 = scmp.ne.s32.totalorder %s180, %s194
      %p196 = scmp.eq.s32.totalorder %s29, 0
      %p197 = por %p195, %p196
      %s199 = sadd.s32 %s198, 1
      %p202 = scmp.eq.s32.totalorder %s23, 1
      %p203 = scmp.ne.s32.totalorder %s198, %s200
      %p204 = scmp.eq.s32.totalorder %s23, 0
      %p205 = por %p203, %p204
      %p206 = scmp.ne.s32.totalorder %s198, %s200
      %p207 = scmp.eq.s32.totalorder %s28, 1
      %p208 = por %p206, %p207
      %p209 = scmp.ne.s32.totalorder %s200, %s201
      %p210 = scmp.eq.s32.totalorder %s28, 0
      %p211 = por %p209, %p210
      %p212 = scmp.ne.s32.totalorder %s200, %s201
      %p213 = scmp.eq.s32.totalorder %s29, 1
      %p214 = por %p212, %p213
      %p216 = scmp.ne.s32.totalorder %s201, %s215
      %p217 = scmp.eq.s32.totalorder %s29, 0
      %p218 = por %p216, %p217
      %s220 = sadd.s32 %s219, 1
      %p223 = scmp.eq.s32.totalorder %s23, 1
      %p224 = scmp.ne.s32.totalorder %s219, %s221
      %p225 = scmp.eq.s32.totalorder %s23, 0
      %p226 = por %p224, %p225
      %p227 = scmp.ne.s32.totalorder %s219, %s221
      %p228 = scmp.eq.s32.totalorder %s28, 1
      %p229 = por %p227, %p228
      %p230 = scmp.ne.s32.totalorder %s221, %s222
      %p231 = scmp.eq.s32.totalorder %s28, 0
      %p232 = por %p230, %p231
      %p233 = scmp.ne.s32.totalorder %s221, %s222
      %p234 = scmp.eq.s32.totalorder %s29, 1
      %p235 = por %p233, %p234
      %p237 = scmp.ne.s32.totalorder %s222, %s236
      %p238 = scmp.eq.s32.totalorder %s29, 0
      %p239 = por %p237, %p238
      %s241 = sadd.s32 %s240, 1
      %p244 = scmp.eq.s32.totalorder %s23, 1
      %p245 = scmp.ne.s32.totalorder %s240, %s242
      %p246 = scmp.eq.s32.totalorder %s23, 0
      %p247 = por %p245, %p246
      %p248 = scmp.ne.s32.totalorder %s240, %s242
      %p249 = scmp.eq.s32.totalorder %s28, 1
      %p250 = por %p248, %p249
      %p251 = scmp.ne.s32.totalorder %s242, %s243
      %p252 = scmp.eq.s32.totalorder %s28, 0
      %p253 = por %p251, %p252
      %p254 = scmp.ne.s32.totalorder %s242, %s243
      %p255 = scmp.eq.s32.totalorder %s29, 1
      %p256 = por %p254, %p255
      %p258 = scmp.ne.s32.totalorder %s243, %s257
      %p259 = scmp.eq.s32.totalorder %s29, 0
      %p260 = por %p258, %p259
      %s262 = sadd.s32 %s261, 1
      %p265 = scmp.eq.s32.totalorder %s23, 1
      %p266 = scmp.ne.s32.totalorder %s261, %s263
      %p267 = scmp.eq.s32.totalorder %s23, 0
      %p268 = por %p266, %p267
      %p269 = scmp.ne.s32.totalorder %s261, %s263
      %p270 = scmp.eq.s32.totalorder %s28, 1
      %p271 = por %p269, %p270
      %p272 = scmp.ne.s32.totalorder %s263, %s264
      %p273 = scmp.eq.s32.totalorder %s28, 0
      %p274 = por %p272, %p273
      %p275 = scmp.ne.s32.totalorder %s263, %s264
      %p276 = scmp.eq.s32.totalorder %s29, 1
      %p277 = por %p275, %p276
      %p279 = scmp.ne.s32.totalorder %s264, %s278
      %p280 = scmp.eq.s32.totalorder %s29, 0
      %p281 = por %p279, %p280
      %s283 = sadd.s32 %s282, 1
      %p286 = scmp.eq.s32.totalorder %s23, 1
      %p287 = scmp.ne.s32.totalorder %s282, %s284
      %p288 = scmp.eq.s32.totalorder %s23, 0
      %p289 = por %p287, %p288
      %p290 = scmp.ne.s32.totalorder %s282, %s284
      %p291 = scmp.eq.s32.totalorder %s28, 1
      %p292 = por %p290, %p291
      %p293 = scmp.ne.s32.totalorder %s284, %s285
      %p294 = scmp.eq.s32.totalorder %s28, 0
      %p295 = por %p293, %p294
      %p296 = scmp.ne.s32.totalorder %s284, %s285
      %p297 = scmp.eq.s32.totalorder %s29, 1
      %p298 = por %p296, %p297
      %p300 = scmp.ne.s32.totalorder %s285, %s299
      %p301 = scmp.eq.s32.totalorder %s29, 0
      %p302 = por %p300, %p301
      %s303 = ssub.s32 %s23, %s30
      %p304 = scmp.eq.s32.totalorder %s303, 0
      %s306 = sadd.s32 %s305, 1
      %s307 = scalar_select %p304, %s305, %s306
      %p310 = pneg %p304
      %p311 = scmp.eq.s32.totalorder %s23, 1
      %p312 = por %p310, %p311
      %p313 = scmp.ne.s32.totalorder %s305, %s308
      %p314 = scmp.eq.s32.totalorder %s23, 0
      %p315 = por %p313, %p314
      %p316 = scmp.ne.s32.totalorder %s305, %s308
      %p317 = scmp.eq.s32.totalorder %s28, 1
      %p318 = por %p316, %p317
      %p319 = scmp.ne.s32.totalorder %s308, %s309
      %p320 = scmp.eq.s32.totalorder %s28, 0
      %p321 = por %p319, %p320
      %p322 = scmp.ne.s32.totalorder %s308, %s309
      %p323 = scmp.eq.s32.totalorder %s29, 1
      %p324 = por %p322, %p323
      %p326 = scmp.ne.s32.totalorder %s309, %s325
      %p327 = scmp.eq.s32.totalorder %s29, 0
      %p328 = por %p326, %p327
      %s329 = ssub.s32 %s23, %s30
      %p330 = scmp.eq.s32.totalorder %s329, 0
      %s332 = sadd.s32 %s331, 1
      %s333 = scalar_select %p330, %s331, %s332
      %p336 = pneg %p330
      %p337 = scmp.eq.s32.totalorder %s23, 1
      %p338 = por %p336, %p337
      %p339 = scmp.ne.s32.totalorder %s331, %s334
      %p340 = scmp.eq.s32.totalorder %s23, 0
      %p341 = por %p339, %p340
      %p342 = scmp.ne.s32.totalorder %s331, %s334
      %p343 = scmp.eq.s32.totalorder %s28, 1
      %p344 = por %p342, %p343
      %p345 = scmp.ne.s32.totalorder %s334, %s335
      %p346 = scmp.eq.s32.totalorder %s28, 0
      %p347 = por %p345, %p346
      %p348 = scmp.ne.s32.totalorder %s334, %s335
      %p349 = scmp.eq.s32.totalorder %s29, 1
      %p350 = por %p348, %p349
      %p352 = scmp.ne.s32.totalorder %s335, %s351
      %p353 = scmp.eq.s32.totalorder %s29, 0
      %p354 = por %p352, %p353
      %p355 = scmp.le.s32.totalorder 1, %s23
      %p356 = scmp.lt.s32.totalorder %s23, 3
      %p357 = pnand %p355, %p356
      %p358 = pneg %p357
      // Predicated region
      $region9: #{hybrid_bert_forward.1} parent=5 // pred_check
        _
      $region10: #{hybrid_bert_forward.1} parent=5 // pred_check_branch
        %360 = sbr.rel (%p357) target = $region12
      $region11: #{hybrid_bert_forward.1} parent=5 // pred_region
        %s361 = ssub.s32 %s23, 1
        // Predicated region
        $region13: #{hybrid_bert_forward.1} parent=11 // pred_check
          %p362 = pneg %p148
        $region14: #{hybrid_bert_forward.1} parent=11 // pred_check_branch
          %364 = sbr.rel (%p362) target = $region16
        $region15: #{hybrid_bert_forward.1} parent=11 // pred_region
          _
        $region16: #{hybrid_bert_forward.1} parent=11 // pred_fallthru
          _
        // Predicated region
        $region17: #{hybrid_bert_forward.1} parent=11 // pred_check
          %p365 = pneg %p169
        $region18: #{hybrid_bert_forward.1} parent=11 // pred_check_branch
          %367 = sbr.rel (%p365) target = $region20
        $region19: #{hybrid_bert_forward.1} parent=11 // pred_region
          _
        $region20: #{hybrid_bert_forward.1} parent=11 // pred_fallthru
          _
        // Predicated region
        $region21: #{hybrid_bert_forward.1} parent=11 // pred_check
          %p368 = pneg %p190
        $region22: #{hybrid_bert_forward.1} parent=11 // pred_check_branch
          %370 = sbr.rel (%p368) target = $region24
        $region23: #{hybrid_bert_forward.1} parent=11 // pred_region
          _
        $region24: #{hybrid_bert_forward.1} parent=11 // pred_fallthru
          _
        // Predicated region
        $region25: #{hybrid_bert_forward.1} parent=11 // pred_check
          %p371 = pneg %p211
        $region26: #{hybrid_bert_forward.1} parent=11 // pred_check_branch
          %373 = sbr.rel (%p371) target = $region28
        $region27: #{hybrid_bert_forward.1} parent=11 // pred_region
          _
        $region28: #{hybrid_bert_forward.1} parent=11 // pred_fallthru
          _
        // Predicated region
        $region29: #{hybrid_bert_forward.1} parent=11 // pred_check
          %p374 = pneg %p232
        $region30: #{hybrid_bert_forward.1} parent=11 // pred_check_branch
          %376 = sbr.rel (%p374) target = $region32
        $region31: #{hybrid_bert_forward.1} parent=11 // pred_region
          _
        $region32: #{hybrid_bert_forward.1} parent=11 // pred_fallthru
          _
        // Predicated region
        $region33: #{hybrid_bert_forward.1} parent=11 // pred_check
          %p377 = pneg %p253
        $region34: #{hybrid_bert_forward.1} parent=11 // pred_check_branch
          %379 = sbr.rel (%p377) target = $region36
        $region35: #{hybrid_bert_forward.1} parent=11 // pred_region
          _
        $region36: #{hybrid_bert_forward.1} parent=11 // pred_fallthru
          _
        // Predicated region
        $region37: #{hybrid_bert_forward.1} parent=11 // pred_check
          %p380 = pneg %p274
        $region38: #{hybrid_bert_forward.1} parent=11 // pred_check_branch
          %382 = sbr.rel (%p380) target = $region40
        $region39: #{hybrid_bert_forward.1} parent=11 // pred_region
          _
        $region40: #{hybrid_bert_forward.1} parent=11 // pred_fallthru
          _
        // Predicated region
        $region41: #{hybrid_bert_forward.1} parent=11 // pred_check
          %p383 = pneg %p295
        $region42: #{hybrid_bert_forward.1} parent=11 // pred_check_branch
          %385 = sbr.rel (%p383) target = $region44
        $region43: #{hybrid_bert_forward.1} parent=11 // pred_region
          _
        $region44: #{hybrid_bert_forward.1} parent=11 // pred_fallthru
          _
      $region12: #{hybrid_bert_forward.1} parent=5 // pred_fallthru
        _
      %p386 = scmp.lt.s32.totalorder %s23, 2
      // Predicated region
      $region45: #{hybrid_bert_forward.1} parent=5 // pred_check
        %p387 = pneg %p386
      $region46: #{hybrid_bert_forward.1} parent=5 // pred_check_branch
        %389 = sbr.rel (%p387) target = $region48
      $region47: #{hybrid_bert_forward.1} parent=5 // pred_region
        // Predicated region
        $region49: #{hybrid_bert_forward.1} parent=47 // pred_check
          %p390 = pneg %p43
        $region50: #{hybrid_bert_forward.1} parent=47 // pred_check_branch
          %392 = sbr.rel (%p390) target = $region52
        $region51: #{hybrid_bert_forward.1} parent=47 // pred_region
          %p393 = scmp.lt.s32.totalorder %s23, 1
          %s394 = scalar_select %p393, %s23, 1
          %s395 = smul.addr %s394, 8
          %s396 = scalar_lea.vmem %s0, %s395
        $region52: #{hybrid_bert_forward.1} parent=47 // pred_fallthru
          _
        // Predicated region
        $region53: #{hybrid_bert_forward.1} parent=47 // pred_check
          %p397 = pneg %p69
        $region54: #{hybrid_bert_forward.1} parent=47 // pred_check_branch
          %399 = sbr.rel (%p397) target = $region56
        $region55: #{hybrid_bert_forward.1} parent=47 // pred_region
          %p400 = scmp.lt.s32.totalorder %s23, 1
          %s401 = scalar_select %p400, %s23, 1
          %s402 = scalar_lea.vmem %s1, %s401
        $region56: #{hybrid_bert_forward.1} parent=47 // pred_fallthru
          _
        // Predicated region
        $region57: #{hybrid_bert_forward.1} parent=47 // pred_check
          %p403 = pneg %p95
        $region58: #{hybrid_bert_forward.1} parent=47 // pred_check_branch
          %405 = sbr.rel (%p403) target = $region60
        $region59: #{hybrid_bert_forward.1} parent=47 // pred_region
          %p406 = scmp.lt.s32.totalorder %s23, 1
          %s407 = scalar_select %p406, %s23, 1
          %s408 = scalar_lea.vmem %s2, %s407
        $region60: #{hybrid_bert_forward.1} parent=47 // pred_fallthru
          _
        // Predicated region
        $region61: #{hybrid_bert_forward.1} parent=47 // pred_check
          %p409 = pneg %p121
        $region62: #{hybrid_bert_forward.1} parent=47 // pred_check_branch
          %411 = sbr.rel (%p409) target = $region64
        $region63: #{hybrid_bert_forward.1} parent=47 // pred_region
          %p412 = scmp.lt.s32.totalorder %s23, 1
          %s413 = scalar_select %p412, %s23, 1
          %s414 = scalar_lea.vmem %s3, %s413
        $region64: #{hybrid_bert_forward.1} parent=47 // pred_fallthru
          _
      $region48: #{hybrid_bert_forward.1} parent=5 // pred_fallthru
        _
      %p415 = scmp.le.s32.totalorder 1, %s23
      %p416 = scmp.lt.s32.totalorder %s23, 3
      %p417 = pnand %p415, %p416
      %p418 = pneg %p417
      // Predicated region
      $region65: #{hybrid_bert_forward.1} parent=5 // pred_check
        _
      $region66: #{hybrid_bert_forward.1} parent=5 // pred_check_branch
        %420 = sbr.rel (%p417) target = $region68
      $region67: #{hybrid_bert_forward.1} parent=5 // pred_region
        %s421 = ssub.s32 %s23, 1
        %p422 = scmp.lt.s32.totalorder %s28, 1
        %s423 = scalar_select %p422, %s28, 1
        %s424 = smul.addr %s423, 8
        %s425 = scalar_lea.vmem %s0, %s424
        %p426 = pneg %p49
        %p427 = pneg %p46
        %p428 = scmp.lt.s32.totalorder %s28, 1
        %s429 = scalar_select %p428, %s28, 1
        %s430 = scalar_lea.vmem %s1, %s429
        %p431 = pneg %p75
        %p432 = pneg %p72
        %p433 = scmp.lt.s32.totalorder %s28, 1
        %s434 = scalar_select %p433, %s28, 1
        %s435 = scalar_lea.vmem %s2, %s434
        %p436 = pneg %p101
        %p437 = pneg %p98
        %p438 = scmp.lt.s32.totalorder %s28, 1
        %s439 = scalar_select %p438, %s28, 1
        %s440 = scalar_lea.vmem %s3, %s439
        %p441 = pneg %p127
        %p442 = pneg %p124
        %p443 = pneg %p148
        %p444 = pneg %p145
        %p445 = pneg %p169
        %p446 = pneg %p166
        %p447 = pneg %p190
        %p448 = pneg %p187
        %p449 = pneg %p211
        %p450 = pneg %p208
        %p451 = pneg %p232
        %p452 = pneg %p229
        %p453 = pneg %p253
        %p454 = pneg %p250
        %p455 = pneg %p274
        %p456 = pneg %p271
        %p457 = pneg %p295
        %p458 = pneg %p292
        %p459 = pneg %p321
        %p460 = pneg %p318
        %s461 = sand.u32 %s308, 1
        %s462 = scalar_lea.sflag [#allocation3], %s461
        %s463 = sand.u32 %s308, 1
        %s464 = scalar_lea.vmem [#allocation2], %s463
        %p465 = pneg %p347
        %p466 = pneg %p344
        %p467 = scmp.lt.s32.totalorder %s28, 1
        %s468 = scalar_select %p467, %s28, 1
        %s469 = scalar_lea.vmem %s13, %s468
        %p470 = scmp.lt.s32.totalorder %s28, 1
        %s471 = scalar_select %p470, %s28, 1
        %s472 = smul.addr %s471, 8
        %s473 = scalar_lea.vmem %s0, %s472
        %p474 = scmp.lt.s32.totalorder %s28, 1
        %s475 = scalar_select %p474, %s28, 1
        %s476 = scalar_lea.vmem %s1, %s475
        %p477 = scmp.lt.s32.totalorder %s28, 1
        %s478 = scalar_select %p477, %s28, 1
        %s479 = scalar_lea.vmem %s2, %s478
        %p480 = scmp.lt.s32.totalorder %s28, 1
        %s481 = scalar_select %p480, %s28, 1
        %s482 = scalar_lea.vmem %s3, %s481
        %p483 = scmp.lt.s32.totalorder %s28, 1
        %s484 = scalar_select %p483, %s28, 1
        %s485 = scalar_lea.vmem %s13, %s484
        %v487 = vld [vmem:[%s473] sm:$0xff]
        %v488 = vld [vmem:[%s4] ss:$0 sm:$0xff]
        %v489 = vld [vmem:[%s4 + $0x1] ss:$0 sm:$0xff]
        %vm490 = vcmask 261120
        %v491 = vsel %vm490, %v487, 0.0
        %492 = vadd.xlane.f32.xlu0 %v491
        %v493 = vpop.xlane.xlu0 %492
        %v494 = vrcp.pop 32.0
        %v495 = vmul.f32 %v493, %v494
        %v496 = vsub.f32 %v487, %v495
        %v497 = vmul.f32 %v496, %v496
        %v498 = vsel %vm490, %v497, 0.0
        %499 = vadd.xlane.f32.xlu0 %v498
        %v500 = vpop.xlane.xlu0 %499
        %v501 = vmul.f32 %v500, %v494
        %v502 = vadd.f32 %v501, 1e-12
        %v503 = vrsqrt.pop %v502
        %v504 = vmul.f32 %v496, %v503
        %v505 = vmul.f32 %v504, %v488
        %v506 = vadd.f32 %v505, %v489
        %v507 = vld [vmem:[%s476] sm:$0x1]
        %v508 = vsub.f32 1.0, %v507
        %v509 = vmul.f32 %v508, -10000.0
        %v510 = vld [vmem:[%s5] sm:$0xf]
        %v511 = vld [vmem:[%s5 + $0x4] sm:$0xf]
        %v512 = vld [vmem:[%s5 + $0x8] sm:$0xf]
        %v513 = vld [vmem:[%s5 + $0xc] sm:$0xf]
        %v514 = vld [vmem:[%s6] sm:$0xf]
        %v515 = vld [vmem:[%s6 + $0x4] sm:$0xf]
        %v516 = vld [vmem:[%s6 + $0x8] sm:$0xf]
        %v517 = vld [vmem:[%s6 + $0xc] sm:$0xf]
        %v518 = vld [vmem:[%s7] sm:$0xf]
        %v519 = vld [vmem:[%s7 + $0x4] sm:$0xf]
        %v520 = vld [vmem:[%s7 + $0x8] sm:$0xf]
        %v521 = vld [vmem:[%s7 + $0xc] sm:$0xf]
        %v522 = vld [vmem:[%s8] sm:$0xf]
        %v523 = vld [vmem:[%s8 + $0x4] sm:$0xf]
        %v524 = vld [vmem:[%s8 + $0x8] sm:$0xf]
        %v525 = vld [vmem:[%s8 + $0xc] sm:$0xf]
        %v526 = vld [vmem:[%s8 + $0x10] sm:$0xf]
        %v527 = vld [vmem:[%s8 + $0x14] sm:$0xf]
        %v528 = vld [vmem:[%s8 + $0x18] sm:$0xf]
        %v529 = vld [vmem:[%s8 + $0x1c] sm:$0xf]
        %v530 = vpack.c.bf16 %v506, %v506
        %v531 = vld [vmem:[%s4 + $0x2] ss:$0 sm:$0xff]
        %v536 = vunpack.c.l.b16 %v510
        %v537 = vunpack.c.l.b16 %v511
        %v538 = vunpack.c.l.b16 %v512
        %v539 = vunpack.c.l.b16 %v513
        %v540 = vpack.c.b16 %v537, %v536
        %v541 = vpack.c.b16 %v539, %v538
        %v545 = vsel %vm490, %v530, 0
        %547 = vmatprep.subr.bf16.mxu0 0
        %548 = vmatpush1.bf16.msra.mxu0 %v540
        %549 = vmatprep.subr.bf16.mxu0 0
        %550 = vmatpush1.bf16.msra.mxu0 %v541
        %551 = vmatprep.subr.bf16.mxu0 0
        %552 = vmatpush1.bf16.msra.mxu0 0
        %553 = vmatprep.subr.bf16.mxu0 0
        %554 = vmatpush1.bf16.msra.mxu0 0
        %555 = vmatprep.subr.bf16.mxu0 0
        %556 = vmatpush1.bf16.msra.mxu0 0
        %557 = vmatprep.subr.bf16.mxu0 0
        %558 = vmatpush1.bf16.msra.mxu0 0
        %559 = vmatprep.subr.bf16.mxu0 0
        %560 = vmatpush1.bf16.msra.mxu0 0
        %561 = vmatprep.subr.bf16.mxu0 0
        %562 = vmatpush1.bf16.msra.mxu0 0
        %563 = vmatprep.subr.bf16.mxu0 0
        %564 = vmatpush1.bf16.msra.mxu0 0
        %565 = vmatprep.subr.bf16.mxu0 0
        %566 = vmatpush1.bf16.msra.mxu0 0
        %567 = vmatprep.subr.bf16.mxu0 0
        %568 = vmatpush1.bf16.msra.mxu0 0
        %569 = vmatprep.subr.bf16.mxu0 0
        %570 = vmatpush1.bf16.msra.mxu0 0
        %571 = vmatprep.subr.bf16.mxu0 0
        %572 = vmatpush1.bf16.msra.mxu0 0
        %573 = vmatprep.subr.bf16.mxu0 0
        %574 = vmatpush1.bf16.msra.mxu0 0
        %575 = vmatprep.subr.bf16.mxu0 0
        %576 = vmatpush1.bf16.msra.mxu0 0
        %577 = vmatprep.subr.bf16.mxu0 0
        %578 = vmatpush1.bf16.msra.mxu0 0
        %579 = vmatprep.mubr.bf16.mxu0 0
        %580 = vmatmul.mubr.bf16.gmra.mrb[0].mxu0 %v545
        %v581 = vpop.f32.mrb[0].mxu0
        %v582 = vadd.f32 %v531, %v581
        %v583 = vpop.f32.mrb[0].mxu0
        %v584 = vpop.f32.mrb[0].mxu0
        %v585 = vpop.f32.mrb[0].mxu0
        %586 = vdwg.mxu0
        %v587 = vpack.c.bf16 %v582, %v582
        %589 = vrot.lane.b32.xlu0 %v587, 96
        %v590 = vpop.permute.xlu0 %589
        %vm591 = vcmask 130048
        %v593 = vsel %vm591, %v587, 0
        %v596 = vsel %vm591, %v590, 0
        %598 = vmatprep.subr.bf16.mxu0 0
        %599 = vmatpush1.bf16.xpose.msra.mxu0 %v596
        %600 = vmatprep.subr.bf16.mxu0 0
        %601 = vmatpush1.bf16.xpose.msra.mxu0 0
        %602 = vmatprep.subr.bf16.mxu0 0
        %603 = vmatpush1.bf16.xpose.msra.mxu0 0
        %604 = vmatprep.subr.bf16.mxu0 0
        %605 = vmatpush1.bf16.xpose.msra.mxu0 0
        %606 = vmatprep.subr.bf16.mxu0 0
        %607 = vmatpush1.bf16.xpose.msra.mxu0 0
        %608 = vmatprep.subr.bf16.mxu0 0
        %609 = vmatpush1.bf16.xpose.msra.mxu0 0
        %610 = vmatprep.subr.bf16.mxu0 0
        %611 = vmatpush1.bf16.xpose.msra.mxu0 0
        %612 = vmatprep.subr.bf16.mxu0 0
        %613 = vmatpush1.bf16.xpose.msra.mxu0 0
        %614 = vmatprep.subr.bf16.mxu0 0
        %615 = vmatpush1.bf16.xpose.msra.mxu0 0
        %616 = vmatprep.subr.bf16.mxu0 0
        %617 = vmatpush1.bf16.xpose.msra.mxu0 0
        %618 = vmatprep.subr.bf16.mxu0 0
        %619 = vmatpush1.bf16.xpose.msra.mxu0 0
        %620 = vmatprep.subr.bf16.mxu0 0
        %621 = vmatpush1.bf16.xpose.msra.mxu0 0
        %622 = vmatprep.subr.bf16.mxu0 0
        %623 = vmatpush1.bf16.xpose.msra.mxu0 0
        %624 = vmatprep.subr.bf16.mxu0 0
        %625 = vmatpush1.bf16.xpose.msra.mxu0 0
        %626 = vmatprep.subr.bf16.mxu0 0
        %627 = vmatpush1.bf16.xpose.msra.mxu0 0
        %628 = vmatprep.subr.bf16.mxu0 0
        %629 = vmatpush1.bf16.xpose.msra.mxu0 0
        %630 = vmatprep.mubr.bf16.mxu0 0
        %631 = vmatmul.mubr.bf16.gmra.mrb[0].mxu0 %v593
        %v632 = vpop.f32.mrb[0].mxu0
        %v633 = vadd.f32 0.0, %v632
        %v634 = vpop.f32.mrb[0].mxu0
        %v635 = vpop.f32.mrb[0].mxu0
        %v636 = vpop.f32.mrb[0].mxu0
        %637 = vdwg.mxu0
        %v638 = vmul.f32 %v633, 0.25
        %v640 = vlaneseq
        %v641 = vshrl.u32 %v640, 7
        %v642 = vsub.s32 0, %v641
        %v643 = vrot.slane %v509, %v642
        %v645 = vadd.f32 %v638, %v643
        %vm646 = vcmask 64512
        %v647 = vsel %vm646, %v645, -inf
        %648 = vmax.xlane.f32.xlu0 %v647
        %v649 = vpop.xlane.xlu0 %648
        %v650 = vsub.f32 %v645, %v649
        %v651 = vmul.f32 %v650, 1.442695
        %v652 = vpow.pop %v651
        %v653 = vsel %vm646, %v652, 0.0
        %654 = vadd.xlane.f32.xlu0 %v653
        %v655 = vpop.xlane.xlu0 %654
        %v656 = vrcp.pop %v655
        %v657 = vmul.f32 %v652, %v656
        %v658 = vpack.c.bf16 %v657, %v657
        %659 = vrot.lane.b32.xlu0 %v587, 64
        %v660 = vpop.permute.xlu0 %659
        %v662 = vsel %vm646, %v658, 0
        %vm664 = vcmask 1043456
        %v666 = vsel %vm664, %v660, 0
        %668 = vmatprep.subr.bf16.mxu0 0
        %669 = vmatpush1.bf16.msra.mxu0 %v666
        %670 = vmatprep.subr.bf16.mxu0 0
        %671 = vmatpush1.bf16.msra.mxu0 0
        %672 = vmatprep.subr.bf16.mxu0 0
        %673 = vmatpush1.bf16.msra.mxu0 0
        %674 = vmatprep.subr.bf16.mxu0 0
        %675 = vmatpush1.bf16.msra.mxu0 0
        %676 = vmatprep.subr.bf16.mxu0 0
        %677 = vmatpush1.bf16.msra.mxu0 0
        %678 = vmatprep.subr.bf16.mxu0 0
        %679 = vmatpush1.bf16.msra.mxu0 0
        %680 = vmatprep.subr.bf16.mxu0 0
        %681 = vmatpush1.bf16.msra.mxu0 0
        %682 = vmatprep.subr.bf16.mxu0 0
        %683 = vmatpush1.bf16.msra.mxu0 0
        %684 = vmatprep.subr.bf16.mxu0 0
        %685 = vmatpush1.bf16.msra.mxu0 0
        %686 = vmatprep.subr.bf16.mxu0 0
        %687 = vmatpush1.bf16.msra.mxu0 0
        %688 = vmatprep.subr.bf16.mxu0 0
        %689 = vmatpush1.bf16.msra.mxu0 0
        %690 = vmatprep.subr.bf16.mxu0 0
        %691 = vmatpush1.bf16.msra.mxu0 0
        %692 = vmatprep.subr.bf16.mxu0 0
        %693 = vmatpush1.bf16.msra.mxu0 0
        %694 = vmatprep.subr.bf16.mxu0 0
        %695 = vmatpush1.bf16.msra.mxu0 0
        %696 = vmatprep.subr.bf16.mxu0 0
        %697 = vmatpush1.bf16.msra.mxu0 0
        %698 = vmatprep.subr.bf16.mxu0 0
        %699 = vmatpush1.bf16.msra.mxu0 0
        %700 = vmatprep.mubr.bf16.mxu0 0
        %701 = vmatmul.mubr.bf16.gmra.mrb[0].mxu0 %v662
        %v702 = vpop.f32.mrb[0].mxu0
        %v703 = vadd.f32 0.0, %v702
        %v704 = vpop.f32.mrb[0].mxu0
        %v705 = vpop.f32.mrb[0].mxu0
        %v706 = vpop.f32.mrb[0].mxu0
        %707 = vdwg.mxu0
        %v708 = vpack.c.bf16 %v703, %v703
        %709 = vrot.lane.b32.xlu0 %v587, 112
        %v710 = vpop.permute.xlu0 %709
        %711 = vrot.lane.b32.xlu0 %v587, 80
        %v712 = vpop.permute.xlu0 %711
        %v714 = vsel %vm591, %v710, 0
        %v717 = vsel %vm591, %v712, 0
        %719 = vmatprep.subr.bf16.mxu0 0
        %720 = vmatpush1.bf16.xpose.msra.mxu0 %v717
        %721 = vmatprep.subr.bf16.mxu0 0
        %722 = vmatpush1.bf16.xpose.msra.mxu0 0
        %723 = vmatprep.subr.bf16.mxu0 0
        %724 = vmatpush1.bf16.xpose.msra.mxu0 0
        %725 = vmatprep.subr.bf16.mxu0 0
        %726 = vmatpush1.bf16.xpose.msra.mxu0 0
        %727 = vmatprep.subr.bf16.mxu0 0
        %728 = vmatpush1.bf16.xpose.msra.mxu0 0
        %729 = vmatprep.subr.bf16.mxu0 0
        %730 = vmatpush1.bf16.xpose.msra.mxu0 0
        %731 = vmatprep.subr.bf16.mxu0 0
        %732 = vmatpush1.bf16.xpose.msra.mxu0 0
        %733 = vmatprep.subr.bf16.mxu0 0
        %734 = vmatpush1.bf16.xpose.msra.mxu0 0
        %735 = vmatprep.subr.bf16.mxu0 0
        %736 = vmatpush1.bf16.xpose.msra.mxu0 0
        %737 = vmatprep.subr.bf16.mxu0 0
        %738 = vmatpush1.bf16.xpose.msra.mxu0 0
        %739 = vmatprep.subr.bf16.mxu0 0
        %740 = vmatpush1.bf16.xpose.msra.mxu0 0
        %741 = vmatprep.subr.bf16.mxu0 0
        %742 = vmatpush1.bf16.xpose.msra.mxu0 0
        %743 = vmatprep.subr.bf16.mxu0 0
        %744 = vmatpush1.bf16.xpose.msra.mxu0 0
        %745 = vmatprep.subr.bf16.mxu0 0
        %746 = vmatpush1.bf16.xpose.msra.mxu0 0
        %747 = vmatprep.subr.bf16.mxu0 0
        %748 = vmatpush1.bf16.xpose.msra.mxu0 0
        %749 = vmatprep.subr.bf16.mxu0 0
        %750 = vmatpush1.bf16.xpose.msra.mxu0 0
        %751 = vmatprep.mubr.bf16.mxu0 0
        %752 = vmatmul.mubr.bf16.gmra.mrb[0].mxu0 %v714
        %v753 = vpop.f32.mrb[0].mxu0
        %v754 = vadd.f32 0.0, %v753
        %v755 = vpop.f32.mrb[0].mxu0
        %v756 = vpop.f32.mrb[0].mxu0
        %v757 = vpop.f32.mrb[0].mxu0
        %758 = vdwg.mxu0
        %v759 = vmul.f32 %v754, 0.25
        %v760 = vadd.f32 %v759, %v643
        %v761 = vsel %vm646, %v760, -inf
        %762 = vmax.xlane.f32.xlu0 %v761
        %v763 = vpop.xlane.xlu0 %762
        %v764 = vsub.f32 %v760, %v763
        %v765 = vmul.f32 %v764, 1.442695
        %v766 = vpow.pop %v765
        %v767 = vsel %vm646, %v766, 0.0
        %768 = vadd.xlane.f32.xlu0 %v767
        %v769 = vpop.xlane.xlu0 %768
        %v770 = vrcp.pop %v769
        %v771 = vmul.f32 %v766, %v770
        %v772 = vpack.c.bf16 %v771, %v771
        %773 = vrot.lane.b32.xlu0 %v587, 48
        %v774 = vpop.permute.xlu0 %773
        %v776 = vsel %vm646, %v772, 0
        %v779 = vsel %vm664, %v774, 0
        %781 = vmatprep.subr.bf16.mxu0 0
        %782 = vmatpush1.bf16.msra.mxu0 %v779
        %783 = vmatprep.subr.bf16.mxu0 0
        %784 = vmatpush1.bf16.msra.mxu0 0
        %785 = vmatprep.subr.bf16.mxu0 0
        %786 = vmatpush1.bf16.msra.mxu0 0
        %787 = vmatprep.subr.bf16.mxu0 0
        %788 = vmatpush1.bf16.msra.mxu0 0
        %789 = vmatprep.subr.bf16.mxu0 0
        %790 = vmatpush1.bf16.msra.mxu0 0
        %791 = vmatprep.subr.bf16.mxu0 0
        %792 = vmatpush1.bf16.msra.mxu0 0
        %793 = vmatprep.subr.bf16.mxu0 0
        %794 = vmatpush1.bf16.msra.mxu0 0
        %795 = vmatprep.subr.bf16.mxu0 0
        %796 = vmatpush1.bf16.msra.mxu0 0
        %797 = vmatprep.subr.bf16.mxu0 0
        %798 = vmatpush1.bf16.msra.mxu0 0
        %799 = vmatprep.subr.bf16.mxu0 0
        %800 = vmatpush1.bf16.msra.mxu0 0
        %801 = vmatprep.subr.bf16.mxu0 0
        %802 = vmatpush1.bf16.msra.mxu0 0
        %803 = vmatprep.subr.bf16.mxu0 0
        %804 = vmatpush1.bf16.msra.mxu0 0
        %805 = vmatprep.subr.bf16.mxu0 0
        %806 = vmatpush1.bf16.msra.mxu0 0
        %807 = vmatprep.subr.bf16.mxu0 0
        %808 = vmatpush1.bf16.msra.mxu0 0
        %809 = vmatprep.subr.bf16.mxu0 0
        %810 = vmatpush1.bf16.msra.mxu0 0
        %811 = vmatprep.subr.bf16.mxu0 0
        %812 = vmatpush1.bf16.msra.mxu0 0
        %813 = vmatprep.mubr.bf16.mxu0 0
        %814 = vmatmul.mubr.bf16.gmra.mrb[0].mxu0 %v776
        %v815 = vpop.f32.mrb[0].mxu0
        %v816 = vadd.f32 0.0, %v815
        %v817 = vpop.f32.mrb[0].mxu0
        %v818 = vpop.f32.mrb[0].mxu0
        %v819 = vpop.f32.mrb[0].mxu0
        %820 = vdwg.mxu0
        %v821 = vpack.c.bf16 %v816, %v816
        %v824 = vunpack.c.l.b16 %v516
        %v825 = vunpack.c.l.b16 %v517
        %v826 = vpack.c.b16 %v825, %v824
        %v829 = vsel %vm591, %v821, 0
        %831 = vmatprep.subr.bf16.mxu0 0
        %832 = vmatpush1.bf16.msra.mxu0 %v826
        %833 = vmatprep.subr.bf16.mxu0 0
        %834 = vmatpush1.bf16.msra.mxu0 0
        %835 = vmatprep.subr.bf16.mxu0 0
        %836 = vmatpush1.bf16.msra.mxu0 0
        %837 = vmatprep.subr.bf16.mxu0 0
        %838 = vmatpush1.bf16.msra.mxu0 0
        %839 = vmatprep.subr.bf16.mxu0 0
        %840 = vmatpush1.bf16.msra.mxu0 0
        %841 = vmatprep.subr.bf16.mxu0 0
        %842 = vmatpush1.bf16.msra.mxu0 0
        %843 = vmatprep.subr.bf16.mxu0 0
        %844 = vmatpush1.bf16.msra.mxu0 0
        %845 = vmatprep.subr.bf16.mxu0 0
        %846 = vmatpush1.bf16.msra.mxu0 0
        %847 = vmatprep.subr.bf16.mxu0 0
        %848 = vmatpush1.bf16.msra.mxu0 0
        %849 = vmatprep.subr.bf16.mxu0 0
        %850 = vmatpush1.bf16.msra.mxu0 0
        %851 = vmatprep.subr.bf16.mxu0 0
        %852 = vmatpush1.bf16.msra.mxu0 0
        %853 = vmatprep.subr.bf16.mxu0 0
        %854 = vmatpush1.bf16.msra.mxu0 0
        %855 = vmatprep.subr.bf16.mxu0 0
        %856 = vmatpush1.bf16.msra.mxu0 0
        %857 = vmatprep.subr.bf16.mxu0 0
        %858 = vmatpush1.bf16.msra.mxu0 0
        %859 = vmatprep.subr.bf16.mxu0 0
        %860 = vmatpush1.bf16.msra.mxu0 0
        %861 = vmatprep.subr.bf16.mxu0 0
        %862 = vmatpush1.bf16.msra.mxu0 0
        %863 = vmatprep.mubr.bf16.mxu0 0
        %864 = vmatmul.mubr.bf16.gmra.mrb[0].mxu0 %v829
        %v865 = vpop.f32.mrb[0].mxu0
        %v866 = vadd.f32 0.0, %v865
        %v867 = vpop.f32.mrb[0].mxu0
        %v868 = vpop.f32.mrb[0].mxu0
        %v869 = vpop.f32.mrb[0].mxu0
        %870 = vdwg.mxu0
        %v873 = vunpack.c.l.b16 %v514
        %v874 = vunpack.c.l.b16 %v515
        %v875 = vpack.c.b16 %v874, %v873
        %v878 = vsel %vm591, %v708, 0
        %880 = vmatprep.subr.bf16.mxu0 0
        %881 = vmatpush1.bf16.msra.mxu0 %v875
        %882 = vmatprep.subr.bf16.mxu0 0
        %883 = vmatpush1.bf16.msra.mxu0 0
        %884 = vmatprep.subr.bf16.mxu0 0
        %885 = vmatpush1.bf16.msra.mxu0 0
        %886 = vmatprep.subr.bf16.mxu0 0
        %887 = vmatpush1.bf16.msra.mxu0 0
        %888 = vmatprep.subr.bf16.mxu0 0
        %889 = vmatpush1.bf16.msra.mxu0 0
        %890 = vmatprep.subr.bf16.mxu0 0
        %891 = vmatpush1.bf16.msra.mxu0 0
        %892 = vmatprep.subr.bf16.mxu0 0
        %893 = vmatpush1.bf16.msra.mxu0 0
        %894 = vmatprep.subr.bf16.mxu0 0
        %895 = vmatpush1.bf16.msra.mxu0 0
        %896 = vmatprep.subr.bf16.mxu0 0
        %897 = vmatpush1.bf16.msra.mxu0 0
        %898 = vmatprep.subr.bf16.mxu0 0
        %899 = vmatpush1.bf16.msra.mxu0 0
        %900 = vmatprep.subr.bf16.mxu0 0
        %901 = vmatpush1.bf16.msra.mxu0 0
        %902 = vmatprep.subr.bf16.mxu0 0
        %903 = vmatpush1.bf16.msra.mxu0 0
        %904 = vmatprep.subr.bf16.mxu0 0
        %905 = vmatpush1.bf16.msra.mxu0 0
        %906 = vmatprep.subr.bf16.mxu0 0
        %907 = vmatpush1.bf16.msra.mxu0 0
        %908 = vmatprep.subr.bf16.mxu0 0
        %909 = vmatpush1.bf16.msra.mxu0 0
        %910 = vmatprep.subr.bf16.mxu0 0
        %911 = vmatpush1.bf16.msra.mxu0 0
        %912 = vmatprep.mubr.bf16.mxu0 0
        %913 = vmatmul.mubr.bf16.gmra.mrb[0].mxu0 %v878
        %v914 = vpop.f32.mrb[0].mxu0
        %v915 = vadd.f32 %v866, %v914
        %v916 = vpop.f32.mrb[0].mxu0
        %v917 = vpop.f32.mrb[0].mxu0
        %v918 = vpop.f32.mrb[0].mxu0
        %919 = vdwg.mxu0
        %v920 = vld [vmem:[%s4 + $0x3] ss:$0 sm:$0xff]
        %v921 = vadd.f32 %v915, %v920
        %v922 = vadd.f32 %v506, %v921
        %v923 = vld [vmem:[%s4 + $0x4] ss:$0 sm:$0xff]
        %v924 = vld [vmem:[%s4 + $0x5] ss:$0 sm:$0xff]
        %v925 = vsel %vm490, %v922, 0.0
        %926 = vadd.xlane.f32.xlu0 %v925
        %v927 = vpop.xlane.xlu0 %926
        %v928 = vmul.f32 %v927, %v494
        %v929 = vsub.f32 %v922, %v928
        %v930 = vmul.f32 %v929, %v929
        %v931 = vsel %vm490, %v930, 0.0
        %932 = vadd.xlane.f32.xlu0 %v931
        %v933 = vpop.xlane.xlu0 %932
        %v934 = vmul.f32 %v933, %v494
        %v935 = vadd.f32 %v934, 1e-12
        %v936 = vrsqrt.pop %v935
        %v937 = vmul.f32 %v929, %v936
        %v938 = vmul.f32 %v937, %v923
        %v939 = vadd.f32 %v938, %v924
        %v940 = vpack.c.bf16 %v939, %v939
        %v941 = vld [vmem:[%s4 + $0x6] ss:$0 sm:$0xff]
        %v946 = vunpack.c.l.b16 %v518
        %v947 = vunpack.c.l.b16 %v519
        %v948 = vunpack.c.l.b16 %v520
        %v949 = vunpack.c.l.b16 %v521
        %v950 = vpack.c.b16 %v947, %v946
        %v951 = vpack.c.b16 %v949, %v948
        %v955 = vsel %vm490, %v940, 0
        %957 = vmatprep.subr.bf16.mxu0 0
        %958 = vmatpush1.bf16.msra.mxu0 %v950
        %959 = vmatprep.subr.bf16.mxu0 0
        %960 = vmatpush1.bf16.msra.mxu0 %v951
        %961 = vmatprep.subr.bf16.mxu0 0
        %962 = vmatpush1.bf16.msra.mxu0 0
        %963 = vmatprep.subr.bf16.mxu0 0
        %964 = vmatpush1.bf16.msra.mxu0 0
        %965 = vmatprep.subr.bf16.mxu0 0
        %966 = vmatpush1.bf16.msra.mxu0 0
        %967 = vmatprep.subr.bf16.mxu0 0
        %968 = vmatpush1.bf16.msra.mxu0 0
        %969 = vmatprep.subr.bf16.mxu0 0
        %970 = vmatpush1.bf16.msra.mxu0 0
        %971 = vmatprep.subr.bf16.mxu0 0
        %972 = vmatpush1.bf16.msra.mxu0 0
        %973 = vmatprep.subr.bf16.mxu0 0
        %974 = vmatpush1.bf16.msra.mxu0 0
        %975 = vmatprep.subr.bf16.mxu0 0
        %976 = vmatpush1.bf16.msra.mxu0 0
        %977 = vmatprep.subr.bf16.mxu0 0
        %978 = vmatpush1.bf16.msra.mxu0 0
        %979 = vmatprep.subr.bf16.mxu0 0
        %980 = vmatpush1.bf16.msra.mxu0 0
        %981 = vmatprep.subr.bf16.mxu0 0
        %982 = vmatpush1.bf16.msra.mxu0 0
        %983 = vmatprep.subr.bf16.mxu0 0
        %984 = vmatpush1.bf16.msra.mxu0 0
        %985 = vmatprep.subr.bf16.mxu0 0
        %986 = vmatpush1.bf16.msra.mxu0 0
        %987 = vmatprep.subr.bf16.mxu0 0
        %988 = vmatpush1.bf16.msra.mxu0 0
        %989 = vmatprep.mubr.bf16.mxu0 0
        %990 = vmatmul.mubr.bf16.gmra.mrb[0].mxu0 %v955
        %v991 = vpop.f32.mrb[0].mxu0
        %v992 = vadd.f32 %v941, %v991
        %v993 = vpop.f32.mrb[0].mxu0
        %v994 = vpop.f32.mrb[0].mxu0
        %v995 = vpop.f32.mrb[0].mxu0
        %996 = vdwg.mxu0
        %v997 = vmul.f32 %v992, 0.5
        %v998 = vmul.f32 %v992, 0.044715
        %v999 = vmul.f32 %v998, %v992
        %v1000 = vmul.f32 %v999, %v992
        %v1001 = vadd.f32 %v992, %v1000
        %v1002 = vmul.f32 %v1001, 0.7978846
        %v1003 = vtanh.pop %v1002
        %v1004 = vadd.f32 %v1003, 1.0
        %v1005 = vmul.f32 %v997, %v1004
        %v1006 = vpack.c.bf16 %v1005, %v1005
        %v1007 = vld [vmem:[%s4 + $0x7] ss:$0 sm:$0xff]
        %v1016 = vunpack.c.l.b16 %v522
        %v1017 = vunpack.c.l.b16 %v523
        %v1018 = vunpack.c.l.b16 %v524
        %v1019 = vunpack.c.l.b16 %v525
        %v1020 = vunpack.c.l.b16 %v526
        %v1021 = vunpack.c.l.b16 %v527
        %v1022 = vunpack.c.l.b16 %v528
        %v1023 = vunpack.c.l.b16 %v529
        %v1024 = vpack.c.b16 %v1017, %v1016
        %v1025 = vpack.c.b16 %v1019, %v1018
        %v1026 = vpack.c.b16 %v1021, %v1020
        %v1027 = vpack.c.b16 %v1023, %v1022
        %vm1032 = vcmask 523264
        %v1034 = vsel %vm1032, %v1006, 0
        %1036 = vmatprep.subr.bf16.mxu0 0
        %1037 = vmatpush1.bf16.msra.mxu0 %v1024
        %1038 = vmatprep.subr.bf16.mxu0 0
        %1039 = vmatpush1.bf16.msra.mxu0 %v1025
        %1040 = vmatprep.subr.bf16.mxu0 0
        %1041 = vmatpush1.bf16.msra.mxu0 %v1026
        %1042 = vmatprep.subr.bf16.mxu0 0
        %1043 = vmatpush1.bf16.msra.mxu0 %v1027
        %1044 = vmatprep.subr.bf16.mxu0 0
        %1045 = vmatpush1.bf16.msra.mxu0 0
        %1046 = vmatprep.subr.bf16.mxu0 0
        %1047 = vmatpush1.bf16.msra.mxu0 0
        %1048 = vmatprep.subr.bf16.mxu0 0
        %1049 = vmatpush1.bf16.msra.mxu0 0
        %1050 = vmatprep.subr.bf16.mxu0 0
        %1051 = vmatpush1.bf16.msra.mxu0 0
        %1052 = vmatprep.subr.bf16.mxu0 0
        %1053 = vmatpush1.bf16.msra.mxu0 0
        %1054 = vmatprep.subr.bf16.mxu0 0
        %1055 = vmatpush1.bf16.msra.mxu0 0
        %1056 = vmatprep.subr.bf16.mxu0 0
        %1057 = vmatpush1.bf16.msra.mxu0 0
        %1058 = vmatprep.subr.bf16.mxu0 0
        %1059 = vmatpush1.bf16.msra.mxu0 0
        %1060 = vmatprep.subr.bf16.mxu0 0
        %1061 = vmatpush1.bf16.msra.mxu0 0
        %1062 = vmatprep.subr.bf16.mxu0 0
        %1063 = vmatpush1.bf16.msra.mxu0 0
        %1064 = vmatprep.subr.bf16.mxu0 0
        %1065 = vmatpush1.bf16.msra.mxu0 0
        %1066 = vmatprep.subr.bf16.mxu0 0
        %1067 = vmatpush1.bf16.msra.mxu0 0
        %1068 = vmatprep.mubr.bf16.mxu0 0
        %1069 = vmatmul.mubr.bf16.gmra.mrb[0].mxu0 %v1034
        %v1070 = vpop.f32.mrb[0].mxu0
        %v1071 = vadd.f32 %v1007, %v1070
        %v1072 = vpop.f32.mrb[0].mxu0
        %v1073 = vpop.f32.mrb[0].mxu0
        %v1074 = vpop.f32.mrb[0].mxu0
        %1075 = vdwg.mxu0
        %v1076 = vadd.f32 %v939, %v1071
        %v1077 = vld [vmem:[%s4 + $0x10] ss:$0 sm:$0xff]
        %v1078 = vld [vmem:[%s4 + $0x11] ss:$0 sm:$0xff]
        %v1079 = vsel %vm490, %v1076, 0.0
        %1080 = vadd.xlane.f32.xlu0 %v1079
        %v1081 = vpop.xlane.xlu0 %1080
        %v1082 = vmul.f32 %v1081, %v494
        %v1083 = vsub.f32 %v1076, %v1082
        %v1084 = vmul.f32 %v1083, %v1083
        %v1085 = vsel %vm490, %v1084, 0.0
        %1086 = vadd.xlane.f32.xlu0 %v1085
        %v1087 = vpop.xlane.xlu0 %1086
        %v1088 = vmul.f32 %v1087, %v494
        %v1089 = vadd.f32 %v1088, 1e-12
        %v1090 = vrsqrt.pop %v1089
        %v1091 = vmul.f32 %v1083, %v1090
        %v1092 = vmul.f32 %v1091, %v1077
        %v1093 = vadd.f32 %v1092, %v1078
        %s1094 = scalar_lea.vmem %s5, 16
        %v1095 = vld [vmem:[%s1094] sm:$0xf]
        %v1096 = vld [vmem:[%s1094 + $0x4] sm:$0xf]
        %v1097 = vld [vmem:[%s1094 + $0x8] sm:$0xf]
        %v1098 = vld [vmem:[%s1094 + $0xc] sm:$0xf]
        %s1099 = scalar_lea.vmem %s6, 16
        %v1100 = vld [vmem:[%s1099] sm:$0xf]
        %v1101 = vld [vmem:[%s1099 + $0x4] sm:$0xf]
        %v1102 = vld [vmem:[%s1099 + $0x8] sm:$0xf]
        %v1103 = vld [vmem:[%s1099 + $0xc] sm:$0xf]
        %s1104 = scalar_lea.vmem %s7, 16
        %v1105 = vld [vmem:[%s1104] sm:$0xf]
        %v1106 = vld [vmem:[%s1104 + $0x4] sm:$0xf]
        %v1107 = vld [vmem:[%s1104 + $0x8] sm:$0xf]
        %v1108 = vld [vmem:[%s1104 + $0xc] sm:$0xf]
        %s1109 = scalar_lea.vmem %s8, 32
        %v1110 = vld [vmem:[%s1109] sm:$0xf]
        %v1111 = vld [vmem:[%s1109 + $0x4] sm:$0xf]
        %v1112 = vld [vmem:[%s1109 + $0x8] sm:$0xf]
        %v1113 = vld [vmem:[%s1109 + $0xc] sm:$0xf]
        %v1114 = vld [vmem:[%s1109 + $0x10] sm:$0xf]
        %v1115 = vld [vmem:[%s1109 + $0x14] sm:$0xf]
        %v1116 = vld [vmem:[%s1109 + $0x18] sm:$0xf]
        %v1117 = vld [vmem:[%s1109 + $0x1c] sm:$0xf]
        %v1118 = vpack.c.bf16 %v1093, %v1093
        %v1119 = vld [vmem:[%s4 + $0x12] ss:$0 sm:$0xff]
        %v1124 = vunpack.c.l.b16 %v1095
        %v1125 = vunpack.c.l.b16 %v1096
        %v1126 = vunpack.c.l.b16 %v1097
        %v1127 = vunpack.c.l.b16 %v1098
        %v1128 = vpack.c.b16 %v1125, %v1124
        %v1129 = vpack.c.b16 %v1127, %v1126
        %v1133 = vsel %vm490, %v1118, 0
        %1135 = vmatprep.subr.bf16.mxu0 0
        %1136 = vmatpush1.bf16.msra.mxu0 %v1128
        %1137 = vmatprep.subr.bf16.mxu0 0
        %1138 = vmatpush1.bf16.msra.mxu0 %v1129
        %1139 = vmatprep.subr.bf16.mxu0 0
        %1140 = vmatpush1.bf16.msra.mxu0 0
        %1141 = vmatprep.subr.bf16.mxu0 0
        %1142 = vmatpush1.bf16.msra.mxu0 0
        %1143 = vmatprep.subr.bf16.mxu0 0
        %1144 = vmatpush1.bf16.msra.mxu0 0
        %1145 = vmatprep.subr.bf16.mxu0 0
        %1146 = vmatpush1.bf16.msra.mxu0 0
        %1147 = vmatprep.subr.bf16.mxu0 0
        %1148 = vmatpush1.bf16.msra.mxu0 0
        %1149 = vmatprep.subr.bf16.mxu0 0
        %1150 = vmatpush1.bf16.msra.mxu0 0
        %1151 = vmatprep.subr.bf16.mxu0 0
        %1152 = vmatpush1.bf16.msra.mxu0 0
        %1153 = vmatprep.subr.bf16.mxu0 0
        %1154 = vmatpush1.bf16.msra.mxu0 0
        %1155 = vmatprep.subr.bf16.mxu0 0
        %1156 = vmatpush1.bf16.msra.mxu0 0
        %1157 = vmatprep.subr.bf16.mxu0 0
        %1158 = vmatpush1.bf16.msra.mxu0 0
        %1159 = vmatprep.subr.bf16.mxu0 0
        %1160 = vmatpush1.bf16.msra.mxu0 0
        %1161 = vmatprep.subr.bf16.mxu0 0
        %1162 = vmatpush1.bf16.msra.mxu0 0
        %1163 = vmatprep.subr.bf16.mxu0 0
        %1164 = vmatpush1.bf16.msra.mxu0 0
        %1165 = vmatprep.subr.bf16.mxu0 0
        %1166 = vmatpush1.bf16.msra.mxu0 0
        %1167 = vmatprep.mubr.bf16.mxu0 0
        %1168 = vmatmul.mubr.bf16.gmra.mrb[0].mxu0 %v1133
        %v1169 = vpop.f32.mrb[0].mxu0
        %v1170 = vadd.f32 %v1119, %v1169
        %v1171 = vpop.f32.mrb[0].mxu0
        %v1172 = vpop.f32.mrb[0].mxu0
        %v1173 = vpop.f32.mrb[0].mxu0
        %1174 = vdwg.mxu0
        %v1175 = vpack.c.bf16 %v1170, %v1170
        %1177 = vrot.lane.b32.xlu0 %v1175, 96
        %v1178 = vpop.permute.xlu0 %1177
        %v1180 = vsel %vm591, %v1175, 0
        %v1183 = vsel %vm591, %v1178, 0
        %1185 = vmatprep.subr.bf16.mxu0 0
        %1186 = vmatpush1.bf16.xpose.msra.mxu0 %v1183
        %1187 = vmatprep.subr.bf16.mxu0 0
        %1188 = vmatpush1.bf16.xpose.msra.mxu0 0
        %1189 = vmatprep.subr.bf16.mxu0 0
        %1190 = vmatpush1.bf16.xpose.msra.mxu0 0
        %1191 = vmatprep.subr.bf16.mxu0 0
        %1192 = vmatpush1.bf16.xpose.msra.mxu0 0
        %1193 = vmatprep.subr.bf16.mxu0 0
        %1194 = vmatpush1.bf16.xpose.msra.mxu0 0
        %1195 = vmatprep.subr.bf16.mxu0 0
        %1196 = vmatpush1.bf16.xpose.msra.mxu0 0
        %1197 = vmatprep.subr.bf16.mxu0 0
        %1198 = vmatpush1.bf16.xpose.msra.mxu0 0
        %1199 = vmatprep.subr.bf16.mxu0 0
        %1200 = vmatpush1.bf16.xpose.msra.mxu0 0
        %1201 = vmatprep.subr.bf16.mxu0 0
        %1202 = vmatpush1.bf16.xpose.msra.mxu0 0
        %1203 = vmatprep.subr.bf16.mxu0 0
        %1204 = vmatpush1.bf16.xpose.msra.mxu0 0
        %1205 = vmatprep.subr.bf16.mxu0 0
        %1206 = vmatpush1.bf16.xpose.msra.mxu0 0
        %1207 = vmatprep.subr.bf16.mxu0 0
        %1208 = vmatpush1.bf16.xpose.msra.mxu0 0
        %1209 = vmatprep.subr.bf16.mxu0 0
        %1210 = vmatpush1.bf16.xpose.msra.mxu0 0
        %1211 = vmatprep.subr.bf16.mxu0 0
        %1212 = vmatpush1.bf16.xpose.msra.mxu0 0
        %1213 = vmatprep.subr.bf16.mxu0 0
        %1214 = vmatpush1.bf16.xpose.msra.mxu0 0
        %1215 = vmatprep.subr.bf16.mxu0 0
        %1216 = vmatpush1.bf16.xpose.msra.mxu0 0
        %1217 = vmatprep.mubr.bf16.mxu0 0
        %1218 = vmatmul.mubr.bf16.gmra.mrb[0].mxu0 %v1180
        %v1219 = vpop.f32.mrb[0].mxu0
        %v1220 = vadd.f32 0.0, %v1219
        %v1221 = vpop.f32.mrb[0].mxu0
        %v1222 = vpop.f32.mrb[0].mxu0
        %v1223 = vpop.f32.mrb[0].mxu0
        %1224 = vdwg.mxu0
        %v1225 = vmul.f32 %v1220, 0.25
        %v1226 = vadd.f32 %v1225, %v643
        %v1227 = vsel %vm646, %v1226, -inf
        %1228 = vmax.xlane.f32.xlu0 %v1227
        %v1229 = vpop.xlane.xlu0 %1228
        %v1230 = vsub.f32 %v1226, %v1229
        %v1231 = vmul.f32 %v1230, 1.442695
        %v1232 = vpow.pop %v1231
        %v1233 = vsel %vm646, %v1232, 0.0
        %1234 = vadd.xlane.f32.xlu0 %v1233
        %v1235 = vpop.xlane.xlu0 %1234
        %v1236 = vrcp.pop %v1235
        %v1237 = vmul.f32 %v1232, %v1236
        %v1238 = vpack.c.bf16 %v1237, %v1237
        %1239 = vrot.lane.b32.xlu0 %v1175, 64
        %v1240 = vpop.permute.xlu0 %1239
        %v1242 = vsel %vm646, %v1238, 0
        %v1245 = vsel %vm664, %v1240, 0
        %1247 = vmatprep.subr.bf16.mxu0 0
        %1248 = vmatpush1.bf16.msra.mxu0 %v1245
        %1249 = vmatprep.subr.bf16.mxu0 0
        %1250 = vmatpush1.bf16.msra.mxu0 0
        %1251 = vmatprep.subr.bf16.mxu0 0
        %1252 = vmatpush1.bf16.msra.mxu0 0
        %1253 = vmatprep.subr.bf16.mxu0 0
        %1254 = vmatpush1.bf16.msra.mxu0 0
        %1255 = vmatprep.subr.bf16.mxu0 0
        %1256 = vmatpush1.bf16.msra.mxu0 0
        %1257 = vmatprep.subr.bf16.mxu0 0
        %1258 = vmatpush1.bf16.msra.mxu0 0
        %1259 = vmatprep.subr.bf16.mxu0 0
        %1260 = vmatpush1.bf16.msra.mxu0 0
        %1261 = vmatprep.subr.bf16.mxu0 0
        %1262 = vmatpush1.bf16.msra.mxu0 0
        %1263 = vmatprep.subr.bf16.mxu0 0
        %1264 = vmatpush1.bf16.msra.mxu0 0
        %1265 = vmatprep.subr.bf16.mxu0 0
        %1266 = vmatpush1.bf16.msra.mxu0 0
        %1267 = vmatprep.subr.bf16.mxu0 0
        %1268 = vmatpush1.bf16.msra.mxu0 0
        %1269 = vmatprep.subr.bf16.mxu0 0
        %1270 = vmatpush1.bf16.msra.mxu0 0
        %1271 = vmatprep.subr.bf16.mxu0 0
        %1272 = vmatpush1.bf16.msra.mxu0 0
        %1273 = vmatprep.subr.bf16.mxu0 0
        %1274 = vmatpush1.bf16.msra.mxu0 0
        %1275 = vmatprep.subr.bf16.mxu0 0
        %1276 = vmatpush1.bf16.msra.mxu0 0
        %1277 = vmatprep.subr.bf16.mxu0 0
        %1278 = vmatpush1.bf16.msra.mxu0 0
        %1279 = vmatprep.mubr.bf16.mxu0 0
        %1280 = vmatmul.mubr.bf16.gmra.mrb[0].mxu0 %v1242
        %v1281 = vpop.f32.mrb[0].mxu0
        %v1282 = vadd.f32 0.0, %v1281
        %v1283 = vpop.f32.mrb[0].mxu0
        %v1284 = vpop.f32.mrb[0].mxu0
        %v1285 = vpop.f32.mrb[0].mxu0
        %1286 = vdwg.mxu0
        %v1287 = vpack.c.bf16 %v1282, %v1282
        %1288 = vrot.lane.b32.xlu0 %v1175, 112
        %v1289 = vpop.permute.xlu0 %1288
        %1290 = vrot.lane.b32.xlu0 %v1175, 80
        %v1291 = vpop.permute.xlu0 %1290
        %v1293 = vsel %vm591, %v1289, 0
        %v1296 = vsel %vm591, %v1291, 0
        %1298 = vmatprep.subr.bf16.mxu0 0
        %1299 = vmatpush1.bf16.xpose.msra.mxu0 %v1296
        %1300 = vmatprep.subr.bf16.mxu0 0
        %1301 = vmatpush1.bf16.xpose.msra.mxu0 0
        %1302 = vmatprep.subr.bf16.mxu0 0
        %1303 = vmatpush1.bf16.xpose.msra.mxu0 0
        %1304 = vmatprep.subr.bf16.mxu0 0
        %1305 = vmatpush1.bf16.xpose.msra.mxu0 0
        %1306 = vmatprep.subr.bf16.mxu0 0
        %1307 = vmatpush1.bf16.xpose.msra.mxu0 0
        %1308 = vmatprep.subr.bf16.mxu0 0
        %1309 = vmatpush1.bf16.xpose.msra.mxu0 0
        %1310 = vmatprep.subr.bf16.mxu0 0
        %1311 = vmatpush1.bf16.xpose.msra.mxu0 0
        %1312 = vmatprep.subr.bf16.mxu0 0
        %1313 = vmatpush1.bf16.xpose.msra.mxu0 0
        %1314 = vmatprep.subr.bf16.mxu0 0
        %1315 = vmatpush1.bf16.xpose.msra.mxu0 0
        %1316 = vmatprep.subr.bf16.mxu0 0
        %1317 = vmatpush1.bf16.xpose.msra.mxu0 0
        %1318 = vmatprep.subr.bf16.mxu0 0
        %1319 = vmatpush1.bf16.xpose.msra.mxu0 0
        %1320 = vmatprep.subr.bf16.mxu0 0
        %1321 = vmatpush1.bf16.xpose.msra.mxu0 0
        %1322 = vmatprep.subr.bf16.mxu0 0
        %1323 = vmatpush1.bf16.xpose.msra.mxu0 0
        %1324 = vmatprep.subr.bf16.mxu0 0
        %1325 = vmatpush1.bf16.xpose.msra.mxu0 0
        %1326 = vmatprep.subr.bf16.mxu0 0
        %1327 = vmatpush1.bf16.xpose.msra.mxu0 0
        %1328 = vmatprep.subr.bf16.mxu0 0
        %1329 = vmatpush1.bf16.xpose.msra.mxu0 0
        %1330 = vmatprep.mubr.bf16.mxu0 0
        %1331 = vmatmul.mubr.bf16.gmra.mrb[0].mxu0 %v1293
        %v1332 = vpop.f32.mrb[0].mxu0
        %v1333 = vadd.f32 0.0, %v1332
        %v1334 = vpop.f32.mrb[0].mxu0
        %v1335 = vpop.f32.mrb[0].mxu0
        %v1336 = vpop.f32.mrb[0].mxu0
        %1337 = vdwg.mxu0
        %v1338 = vmul.f32 %v1333, 0.25
        %v1339 = vadd.f32 %v1338, %v643
        %v1340 = vsel %vm646, %v1339, -inf
        %1341 = vmax.xlane.f32.xlu0 %v1340
        %v1342 = vpop.xlane.xlu0 %1341
        %v1343 = vsub.f32 %v1339, %v1342
        %v1344 = vmul.f32 %v1343, 1.442695
        %v1345 = vpow.pop %v1344
        %v1346 = vsel %vm646, %v1345, 0.0
        %1347 = vadd.xlane.f32.xlu0 %v1346
        %v1348 = vpop.xlane.xlu0 %1347
        %v1349 = vrcp.pop %v1348
        %v1350 = vmul.f32 %v1345, %v1349
        %v1351 = vpack.c.bf16 %v1350, %v1350
        %1352 = vrot.lane.b32.xlu0 %v1175, 48
        %v1353 = vpop.permute.xlu0 %1352
        %v1355 = vsel %vm646, %v1351, 0
        %v1358 = vsel %vm664, %v1353, 0
        %1360 = vmatprep.subr.bf16.mxu0 0
        %1361 = vmatpush1.bf16.msra.mxu0 %v1358
        %1362 = vmatprep.subr.bf16.mxu0 0
        %1363 = vmatpush1.bf16.msra.mxu0 0
        %1364 = vmatprep.subr.bf16.mxu0 0
        %1365 = vmatpush1.bf16.msra.mxu0 0
        %1366 = vmatprep.subr.bf16.mxu0 0
        %1367 = vmatpush1.bf16.msra.mxu0 0
        %1368 = vmatprep.subr.bf16.mxu0 0
        %1369 = vmatpush1.bf16.msra.mxu0 0
        %1370 = vmatprep.subr.bf16.mxu0 0
        %1371 = vmatpush1.bf16.msra.mxu0 0
        %1372 = vmatprep.subr.bf16.mxu0 0
        %1373 = vmatpush1.bf16.msra.mxu0 0
        %1374 = vmatprep.subr.bf16.mxu0 0
        %1375 = vmatpush1.bf16.msra.mxu0 0
        %1376 = vmatprep.subr.bf16.mxu0 0
        %1377 = vmatpush1.bf16.msra.mxu0 0
        %1378 = vmatprep.subr.bf16.mxu0 0
        %1379 = vmatpush1.bf16.msra.mxu0 0
        %1380 = vmatprep.subr.bf16.mxu0 0
        %1381 = vmatpush1.bf16.msra.mxu0 0
        %1382 = vmatprep.subr.bf16.mxu0 0
        %1383 = vmatpush1.bf16.msra.mxu0 0
        %1384 = vmatprep.subr.bf16.mxu0 0
        %1385 = vmatpush1.bf16.msra.mxu0 0
        %1386 = vmatprep.subr.bf16.mxu0 0
        %1387 = vmatpush1.bf16.msra.mxu0 0
        %1388 = vmatprep.subr.bf16.mxu0 0
        %1389 = vmatpush1.bf16.msra.mxu0 0
        %1390 = vmatprep.subr.bf16.mxu0 0
        %1391 = vmatpush1.bf16.msra.mxu0 0
        %1392 = vmatprep.mubr.bf16.mxu0 0
        %1393 = vmatmul.mubr.bf16.gmra.mrb[0].mxu0 %v1355
        %v1394 = vpop.f32.mrb[0].mxu0
        %v1395 = vadd.f32 0.0, %v1394
        %v1396 = vpop.f32.mrb[0].mxu0
        %v1397 = vpop.f32.mrb[0].mxu0
        %v1398 = vpop.f32.mrb[0].mxu0
        %1399 = vdwg.mxu0
        %v1400 = vpack.c.bf16 %v1395, %v1395
        %v1403 = vunpack.c.l.b16 %v1102
        %v1404 = vunpack.c.l.b16 %v1103
        %v1405 = vpack.c.b16 %v1404, %v1403
        %v1408 = vsel %vm591, %v1400, 0
        %1410 = vmatprep.subr.bf16.mxu0 0
        %1411 = vmatpush1.bf16.msra.mxu0 %v1405
        %1412 = vmatprep.subr.bf16.mxu0 0
        %1413 = vmatpush1.bf16.msra.mxu0 0
        %1414 = vmatprep.subr.bf16.mxu0 0
        %1415 = vmatpush1.bf16.msra.mxu0 0
        %1416 = vmatprep.subr.bf16.mxu0 0
        %1417 = vmatpush1.bf16.msra.mxu0 0
        %1418 = vmatprep.subr.bf16.mxu0 0
        %1419 = vmatpush1.bf16.msra.mxu0 0
        %1420 = vmatprep.subr.bf16.mxu0 0
        %1421 = vmatpush1.bf16.msra.mxu0 0
        %1422 = vmatprep.subr.bf16.mxu0 0
        %1423 = vmatpush1.bf16.msra.mxu0 0
        %1424 = vmatprep.subr.bf16.mxu0 0
        %1425 = vmatpush1.bf16.msra.mxu0 0
        %1426 = vmatprep.subr.bf16.mxu0 0
        %1427 = vmatpush1.bf16.msra.mxu0 0
        %1428 = vmatprep.subr.bf16.mxu0 0
        %1429 = vmatpush1.bf16.msra.mxu0 0
        %1430 = vmatprep.subr.bf16.mxu0 0
        %1431 = vmatpush1.bf16.msra.mxu0 0
        %1432 = vmatprep.subr.bf16.mxu0 0
        %1433 = vmatpush1.bf16.msra.mxu0 0
        %1434 = vmatprep.subr.bf16.mxu0 0
        %1435 = vmatpush1.bf16.msra.mxu0 0
        %1436 = vmatprep.subr.bf16.mxu0 0
        %1437 = vmatpush1.bf16.msra.mxu0 0
        %1438 = vmatprep.subr.bf16.mxu0 0
        %1439 = vmatpush1.bf16.msra.mxu0 0
        %1440 = vmatprep.subr.bf16.mxu0 0
        %1441 = vmatpush1.bf16.msra.mxu0 0
        %1442 = vmatprep.mubr.bf16.mxu0 0
        %1443 = vmatmul.mubr.bf16.gmra.mrb[0].mxu0 %v1408
        %v1444 = vpop.f32.mrb[0].mxu0
        %v1445 = vadd.f32 0.0, %v1444
        %v1446 = vpop.f32.mrb[0].mxu0
        %v1447 = vpop.f32.mrb[0].mxu0
        %v1448 = vpop.f32.mrb[0].mxu0
        %1449 = vdwg.mxu0
        %v1452 = vunpack.c.l.b16 %v1100
        %v1453 = vunpack.c.l.b16 %v1101
        %v1454 = vpack.c.b16 %v1453, %v1452
        %v1457 = vsel %vm591, %v1287, 0
        %1459 = vmatprep.subr.bf16.mxu0 0
        %1460 = vmatpush1.bf16.msra.mxu0 %v1454
        %1461 = vmatprep.subr.bf16.mxu0 0
        %1462 = vmatpush1.bf16.msra.mxu0 0
        %1463 = vmatprep.subr.bf16.mxu0 0
        %1464 = vmatpush1.bf16.msra.mxu0 0
        %1465 = vmatprep.subr.bf16.mxu0 0
        %1466 = vmatpush1.bf16.msra.mxu0 0
        %1467 = vmatprep.subr.bf16.mxu0 0
        %1468 = vmatpush1.bf16.msra.mxu0 0
        %1469 = vmatprep.subr.bf16.mxu0 0
        %1470 = vmatpush1.bf16.msra.mxu0 0
        %1471 = vmatprep.subr.bf16.mxu0 0
        %1472 = vmatpush1.bf16.msra.mxu0 0
        %1473 = vmatprep.subr.bf16.mxu0 0
        %1474 = vmatpush1.bf16.msra.mxu0 0
        %1475 = vmatprep.subr.bf16.mxu0 0
        %1476 = vmatpush1.bf16.msra.mxu0 0
        %1477 = vmatprep.subr.bf16.mxu0 0
        %1478 = vmatpush1.bf16.msra.mxu0 0
        %1479 = vmatprep.subr.bf16.mxu0 0
        %1480 = vmatpush1.bf16.msra.mxu0 0
        %1481 = vmatprep.subr.bf16.mxu0 0
        %1482 = vmatpush1.bf16.msra.mxu0 0
        %1483 = vmatprep.subr.bf16.mxu0 0
        %1484 = vmatpush1.bf16.msra.mxu0 0
        %1485 = vmatprep.subr.bf16.mxu0 0
        %1486 = vmatpush1.bf16.msra.mxu0 0
        %1487 = vmatprep.subr.bf16.mxu0 0
        %1488 = vmatpush1.bf16.msra.mxu0 0
        %1489 = vmatprep.subr.bf16.mxu0 0
        %1490 = vmatpush1.bf16.msra.mxu0 0
        %1491 = vmatprep.mubr.bf16.mxu0 0
        %1492 = vmatmul.mubr.bf16.gmra.mrb[0].mxu0 %v1457
        %v1493 = vpop.f32.mrb[0].mxu0
        %v1494 = vadd.f32 %v1445, %v1493
        %v1495 = vpop.f32.mrb[0].mxu0
        %v1496 = vpop.f32.mrb[0].mxu0
        %v1497 = vpop.f32.mrb[0].mxu0
        %1498 = vdwg.mxu0
        %v1499 = vld [vmem:[%s4 + $0x13] ss:$0 sm:$0xff]
        %v1500 = vadd.f32 %v1494, %v1499
        %v1501 = vadd.f32 %v1093, %v1500
        %v1502 = vld [vmem:[%s4 + $0x14] ss:$0 sm:$0xff]
        %v1503 = vld [vmem:[%s4 + $0x15] ss:$0 sm:$0xff]
        %v1504 = vsel %vm490, %v1501, 0.0
        %1505 = vadd.xlane.f32.xlu0 %v1504
        %v1506 = vpop.xlane.xlu0 %1505
        %v1507 = vmul.f32 %v1506, %v494
        %v1508 = vsub.f32 %v1501, %v1507
        %v1509 = vmul.f32 %v1508, %v1508
        %v1510 = vsel %vm490, %v1509, 0.0
        %1511 = vadd.xlane.f32.xlu0 %v1510
        %v1512 = vpop.xlane.xlu0 %1511
        %v1513 = vmul.f32 %v1512, %v494
        %v1514 = vadd.f32 %v1513, 1e-12
        %v1515 = vrsqrt.pop %v1514
        %v1516 = vmul.f32 %v1508, %v1515
        %v1517 = vmul.f32 %v1516, %v1502
        %v1518 = vadd.f32 %v1517, %v1503
        %v1519 = vpack.c.bf16 %v1518, %v1518
        %v1520 = vld [vmem:[%s4 + $0x16] ss:$0 sm:$0xff]
        %v1525 = vunpack.c.l.b16 %v1105
        %v1526 = vunpack.c.l.b16 %v1106
        %v1527 = vunpack.c.l.b16 %v1107
        %v1528 = vunpack.c.l.b16 %v1108
        %v1529 = vpack.c.b16 %v1526, %v1525
        %v1530 = vpack.c.b16 %v1528, %v1527
        %v1534 = vsel %vm490, %v1519, 0
        %1536 = vmatprep.subr.bf16.mxu0 0
        %1537 = vmatpush1.bf16.msra.mxu0 %v1529
        %1538 = vmatprep.subr.bf16.mxu0 0
        %1539 = vmatpush1.bf16.msra.mxu0 %v1530
        %1540 = vmatprep.subr.bf16.mxu0 0
        %1541 = vmatpush1.bf16.msra.mxu0 0
        %1542 = vmatprep.subr.bf16.mxu0 0
        %1543 = vmatpush1.bf16.msra.mxu0 0
        %1544 = vmatprep.subr.bf16.mxu0 0
        %1545 = vmatpush1.bf16.msra.mxu0 0
        %1546 = vmatprep.subr.bf16.mxu0 0
        %1547 = vmatpush1.bf16.msra.mxu0 0
        %1548 = vmatprep.subr.bf16.mxu0 0
        %1549 = vmatpush1.bf16.msra.mxu0 0
        %1550 = vmatprep.subr.bf16.mxu0 0
        %1551 = vmatpush1.bf16.msra.mxu0 0
        %1552 = vmatprep.subr.bf16.mxu0 0
        %1553 = vmatpush1.bf16.msra.mxu0 0
        %1554 = vmatprep.subr.bf16.mxu0 0
        %1555 = vmatpush1.bf16.msra.mxu0 0
        %1556 = vmatprep.subr.bf16.mxu0 0
        %1557 = vmatpush1.bf16.msra.mxu0 0
        %1558 = vmatprep.subr.bf16.mxu0 0
        %1559 = vmatpush1.bf16.msra.mxu0 0
        %1560 = vmatprep.subr.bf16.mxu0 0
        %1561 = vmatpush1.bf16.msra.mxu0 0
        %1562 = vmatprep.subr.bf16.mxu0 0
        %1563 = vmatpush1.bf16.msra.mxu0 0
        %1564 = vmatprep.subr.bf16.mxu0 0
        %1565 = vmatpush1.bf16.msra.mxu0 0
        %1566 = vmatprep.subr.bf16.mxu0 0
        %1567 = vmatpush1.bf16.msra.mxu0 0
        %1568 = vmatprep.mubr.bf16.mxu0 0
        %1569 = vmatmul.mubr.bf16.gmra.mrb[0].mxu0 %v1534
        %v1570 = vpop.f32.mrb[0].mxu0
        %v1571 = vadd.f32 %v1520, %v1570
        %v1572 = vpop.f32.mrb[0].mxu0
        %v1573 = vpop.f32.mrb[0].mxu0
        %v1574 = vpop.f32.mrb[0].mxu0
        %1575 = vdwg.mxu0
        %v1576 = vmul.f32 %v1571, 0.5
        %v1577 = vmul.f32 %v1571, 0.044715
        %v1578 = vmul.f32 %v1577, %v1571
        %v1579 = vmul.f32 %v1578, %v1571
        %v1580 = vadd.f32 %v1571, %v1579
        %v1581 = vmul.f32 %v1580, 0.7978846
        %v1582 = vtanh.pop %v1581
        %v1583 = vadd.f32 %v1582, 1.0
        %v1584 = vmul.f32 %v1576, %v1583
        %v1585 = vpack.c.bf16 %v1584, %v1584
        %v1586 = vld [vmem:[%s4 + $0x17] ss:$0 sm:$0xff]
        %v1595 = vunpack.c.l.b16 %v1110
        %v1596 = vunpack.c.l.b16 %v1111
        %v1597 = vunpack.c.l.b16 %v1112
        %v1598 = vunpack.c.l.b16 %v1113
        %v1599 = vunpack.c.l.b16 %v1114
        %v1600 = vunpack.c.l.b16 %v1115
        %v1601 = vunpack.c.l.b16 %v1116
        %v1602 = vunpack.c.l.b16 %v1117
        %v1603 = vpack.c.b16 %v1596, %v1595
        %v1604 = vpack.c.b16 %v1598, %v1597
        %v1605 = vpack.c.b16 %v1600, %v1599
        %v1606 = vpack.c.b16 %v1602, %v1601
        %v1612 = vsel %vm1032, %v1585, 0
        %1614 = vmatprep.subr.bf16.mxu0 0
        %1615 = vmatpush1.bf16.msra.mxu0 %v1603
        %1616 = vmatprep.subr.bf16.mxu0 0
        %1617 = vmatpush1.bf16.msra.mxu0 %v1604
        %1618 = vmatprep.subr.bf16.mxu0 0
        %1619 = vmatpush1.bf16.msra.mxu0 %v1605
        %1620 = vmatprep.subr.bf16.mxu0 0
        %1621 = vmatpush1.bf16.msra.mxu0 %v1606
        %1622 = vmatprep.subr.bf16.mxu0 0
        %1623 = vmatpush1.bf16.msra.mxu0 0
        %1624 = vmatprep.subr.bf16.mxu0 0
        %1625 = vmatpush1.bf16.msra.mxu0 0
        %1626 = vmatprep.subr.bf16.mxu0 0
        %1627 = vmatpush1.bf16.msra.mxu0 0
        %1628 = vmatprep.subr.bf16.mxu0 0
        %1629 = vmatpush1.bf16.msra.mxu0 0
        %1630 = vmatprep.subr.bf16.mxu0 0
        %1631 = vmatpush1.bf16.msra.mxu0 0
        %1632 = vmatprep.subr.bf16.mxu0 0
        %1633 = vmatpush1.bf16.msra.mxu0 0
        %1634 = vmatprep.subr.bf16.mxu0 0
        %1635 = vmatpush1.bf16.msra.mxu0 0
        %1636 = vmatprep.subr.bf16.mxu0 0
        %1637 = vmatpush1.bf16.msra.mxu0 0
        %1638 = vmatprep.subr.bf16.mxu0 0
        %1639 = vmatpush1.bf16.msra.mxu0 0
        %1640 = vmatprep.subr.bf16.mxu0 0
        %1641 = vmatpush1.bf16.msra.mxu0 0
        %1642 = vmatprep.subr.bf16.mxu0 0
        %1643 = vmatpush1.bf16.msra.mxu0 0
        %1644 = vmatprep.subr.bf16.mxu0 0
        %1645 = vmatpush1.bf16.msra.mxu0 0
        %1646 = vmatprep.mubr.bf16.mxu0 0
        %1647 = vmatmul.mubr.bf16.gmra.mrb[0].mxu0 %v1612
        %v1648 = vpop.f32.mrb[0].mxu0
        %v1649 = vadd.f32 %v1586, %v1648
        %v1650 = vpop.f32.mrb[0].mxu0
        %v1651 = vpop.f32.mrb[0].mxu0
        %v1652 = vpop.f32.mrb[0].mxu0
        %1653 = vdwg.mxu0
        %v1654 = vadd.f32 %v1518, %v1649
        %v1655 = vld [vmem:[%s4 + $0x20] ss:$0 sm:$0xff]
        %v1656 = vld [vmem:[%s4 + $0x21] ss:$0 sm:$0xff]
        %v1657 = vsel %vm490, %v1654, 0.0
        %1658 = vadd.xlane.f32.xlu0 %v1657
        %v1659 = vpop.xlane.xlu0 %1658
        %v1660 = vmul.f32 %v1659, %v494
        %v1661 = vsub.f32 %v1654, %v1660
        %v1662 = vmul.f32 %v1661, %v1661
        %v1663 = vsel %vm490, %v1662, 0.0
        %1664 = vadd.xlane.f32.xlu0 %v1663
        %v1665 = vpop.xlane.xlu0 %1664
        %v1666 = vmul.f32 %v1665, %v494
        %v1667 = vadd.f32 %v1666, 1e-12
        %v1668 = vrsqrt.pop %v1667
        %v1669 = vmul.f32 %v1661, %v1668
        %v1670 = vmul.f32 %v1669, %v1655
        %v1671 = vadd.f32 %v1670, %v1656
        %v1672 = vld [vmem:[%s9] sm:$0xff]
        %v1673 = vld [vmem:[%s9 + $0x8] sm:$0xff]
        %v1674 = vld [vmem:[%s9 + $0x10] sm:$0xff]
        %v1675 = vld [vmem:[%s9 + $0x18] sm:$0xff]
        %v1676 = vpack.c.bf16 %v1671, %v1671
        %v1677 = vld [vmem:[%s479] sm:$0x1]
        %v1678 = vld [vmem:[%s10] sm:$0xf]
        %v1679 = vpack.c.bf16 %v1677, %v1677
        %v1682 = vunpack.c.l.s4 1983009808
        %v1683 = vunpack.c.0.s8 %v1682
        %v1684 = vlaneseq
        %v1685 = vshrl.u32 %v1684, 7
        %v1686 = vsub.s32 %v1683, %v1685
        %v1687 = vrot.slane %v1678, %v1686
        %v1688 = vcombine.high %v1687, %v1687
        %vm1689 = vcmask 31744
        %v1691 = vsel %vm1689, %v1679, 0
        %vm1693 = vcmask 1041408
        %v1695 = vsel %vm1693, %v1687, 0
        %v1698 = vsel %vm1693, %v1688, 0
        %1700 = vmatprep.subr.bf16.mxu0 %v1698
        %1701 = vmatpush1.bf16.msra.mxu0 %v1695
        %1702 = vmatprep.subr.bf16.mxu0 0
        %1703 = vmatpush1.bf16.msra.mxu0 0
        %1704 = vmatprep.subr.bf16.mxu0 0
        %1705 = vmatpush1.bf16.msra.mxu0 0
        %1706 = vmatprep.subr.bf16.mxu0 0
        %1707 = vmatpush1.bf16.msra.mxu0 0
        %1708 = vmatprep.subr.bf16.mxu0 0
        %1709 = vmatpush1.bf16.msra.mxu0 0
        %1710 = vmatprep.subr.bf16.mxu0 0
        %1711 = vmatpush1.bf16.msra.mxu0 0
        %1712 = vmatprep.subr.bf16.mxu0 0
        %1713 = vmatpush1.bf16.msra.mxu0 0
        %1714 = vmatprep.subr.bf16.mxu0 0
        %1715 = vmatpush1.bf16.msra.mxu0 0
        %1716 = vmatprep.subr.bf16.mxu0 0
        %1717 = vmatpush1.bf16.msra.mxu0 0
        %1718 = vmatprep.subr.bf16.mxu0 0
        %1719 = vmatpush1.bf16.msra.mxu0 0
        %1720 = vmatprep.subr.bf16.mxu0 0
        %1721 = vmatpush1.bf16.msra.mxu0 0
        %1722 = vmatprep.subr.bf16.mxu0 0
        %1723 = vmatpush1.bf16.msra.mxu0 0
        %1724 = vmatprep.subr.bf16.mxu0 0
        %1725 = vmatpush1.bf16.msra.mxu0 0
        %1726 = vmatprep.subr.bf16.mxu0 0
        %1727 = vmatpush1.bf16.msra.mxu0 0
        %1728 = vmatprep.subr.bf16.mxu0 0
        %1729 = vmatpush1.bf16.msra.mxu0 0
        %1730 = vmatprep.subr.bf16.mxu0 0
        %1731 = vmatpush1.bf16.msra.mxu0 0
        %1732 = vmatprep.mubr.bf16.mxu0 0
        %1733 = vmatmul.mubr.bf16.gmra.mrb[0].mxu0 %v1691
        %v1734 = vpop.f32.mrb[0].mxu0
        %v1735 = vadd.f32 0.0, %v1734
        %v1736 = vpop.f32.mrb[0].mxu0
        %v1737 = vadd.f32 0.0, %v1736
        %v1738 = vpop.f32.mrb[0].mxu0
        %v1739 = vpop.f32.mrb[0].mxu0
        %1740 = vdwg.mxu0
        %v1745 = vunpack.c.l.b16 %v1672
        %v1746 = vunpack.c.h.b16 %v1672
        %v1747 = vunpack.c.l.b16 %v1673
        %v1748 = vunpack.c.h.b16 %v1673
        %v1749 = vunpack.c.l.b16 %v1674
        %v1750 = vunpack.c.h.b16 %v1674
        %v1751 = vunpack.c.l.b16 %v1675
        %v1752 = vunpack.c.h.b16 %v1675
        %v1753 = vpack.c.b16 %v1747, %v1745
        %v1754 = vpack.c.b16 %v1748, %v1746
        %v1755 = vpack.c.b16 %v1751, %v1749
        %v1756 = vpack.c.b16 %v1752, %v1750
        %v1762 = vsel %vm490, %v1676, 0
        %1764 = vmatprep.subr.bf16.mxu0 %v1754
        %1765 = vmatpush1.bf16.msra.mxu0 %v1753
        %1766 = vmatprep.subr.bf16.mxu0 %v1756
        %1767 = vmatpush1.bf16.msra.mxu0 %v1755
        %1768 = vmatprep.subr.bf16.mxu0 0
        %1769 = vmatpush1.bf16.msra.mxu0 0
        %1770 = vmatprep.subr.bf16.mxu0 0
        %1771 = vmatpush1.bf16.msra.mxu0 0
        %1772 = vmatprep.subr.bf16.mxu0 0
        %1773 = vmatpush1.bf16.msra.mxu0 0
        %1774 = vmatprep.subr.bf16.mxu0 0
        %1775 = vmatpush1.bf16.msra.mxu0 0
        %1776 = vmatprep.subr.bf16.mxu0 0
        %1777 = vmatpush1.bf16.msra.mxu0 0
        %1778 = vmatprep.subr.bf16.mxu0 0
        %1779 = vmatpush1.bf16.msra.mxu0 0
        %1780 = vmatprep.subr.bf16.mxu0 0
        %1781 = vmatpush1.bf16.msra.mxu0 0
        %1782 = vmatprep.subr.bf16.mxu0 0
        %1783 = vmatpush1.bf16.msra.mxu0 0
        %1784 = vmatprep.subr.bf16.mxu0 0
        %1785 = vmatpush1.bf16.msra.mxu0 0
        %1786 = vmatprep.subr.bf16.mxu0 0
        %1787 = vmatpush1.bf16.msra.mxu0 0
        %1788 = vmatprep.subr.bf16.mxu0 0
        %1789 = vmatpush1.bf16.msra.mxu0 0
        %1790 = vmatprep.subr.bf16.mxu0 0
        %1791 = vmatpush1.bf16.msra.mxu0 0
        %1792 = vmatprep.subr.bf16.mxu0 0
        %1793 = vmatpush1.bf16.msra.mxu0 0
        %1794 = vmatprep.subr.bf16.mxu0 0
        %1795 = vmatpush1.bf16.msra.mxu0 0
        %1796 = vmatprep.mubr.bf16.mxu0 0
        %1797 = vmatmul.mubr.bf16.gmra.mrb[0].mxu0 %v1762
        %v1798 = vpop.f32.mrb[0].mxu0
        %v1799 = vadd.f32 %v1735, %v1798
        %v1800 = vpop.f32.mrb[0].mxu0
        %v1801 = vadd.f32 %v1737, %v1800
        %v1802 = vpop.f32.mrb[0].mxu0
        %v1803 = vpop.f32.mrb[0].mxu0
        %1804 = vdwg.mxu0
        %s1805 = scalar_lea.vmem %s4, 34
        %v1806 = vld [vmem:[%s1805] ss:$8 sm:$0x3]
        %v1808 = vlaneseq
        %v1809 = vshrl.u32 %v1808, 7
        %v1810 = vsub.s32 0, %v1809
        %v1811 = vrot.slane %v1806, %v1810
        %v1812 = vlaneseq
        %v1813 = vshrl.u32 %v1812, 7
        %v1814 = vsub.s32 1, %v1813
        %v1815 = vrot.slane %v1806, %v1814
        %v1818 = vadd.f32 %v1799, %v1811
        %v1819 = vadd.f32 %v1801, %v1815
        %v1820 = vmax.f32 %v1818, 0.0
        %v1821 = vmax.f32 %v1819, 0.0
        %v1822 = vld [vmem:[%s11] sm:$0xf]
        %v1823 = vld [vmem:[%s11 + $0x4] sm:$0xf]
        %v1824 = vld [vmem:[%s11 + $0x8] sm:$0xf]
        %v1825 = vld [vmem:[%s11 + $0xc] sm:$0xf]
        %v1826 = vld [vmem:[%s11 + $0x10] sm:$0xf]
        %v1827 = vld [vmem:[%s11 + $0x14] sm:$0xf]
        %v1828 = vld [vmem:[%s11 + $0x18] sm:$0xf]
        %v1829 = vld [vmem:[%s11 + $0x1c] sm:$0xf]
        %v1830 = vld [vmem:[%s11 + $0x20] sm:$0xf]
        %v1831 = vld [vmem:[%s11 + $0x24] sm:$0xf]
        %v1832 = vld [vmem:[%s11 + $0x28] sm:$0xf]
        %v1833 = vld [vmem:[%s11 + $0x2c] sm:$0xf]
        %v1834 = vld [vmem:[%s11 + $0x30] sm:$0xf]
        %v1835 = vld [vmem:[%s11 + $0x34] sm:$0xf]
        %v1836 = vld [vmem:[%s11 + $0x38] sm:$0xf]
        %v1837 = vld [vmem:[%s11 + $0x3c] sm:$0xf]
        %v1838 = vld [vmem:[%s11 + $0x40] sm:$0xf]
        %v1839 = vld [vmem:[%s11 + $0x44] sm:$0xf]
        %v1840 = vld [vmem:[%s11 + $0x48] sm:$0xf]
        %v1841 = vld [vmem:[%s11 + $0x4c] sm:$0xf]
        %v1842 = vld [vmem:[%s11 + $0x50] sm:$0xf]
        %v1843 = vld [vmem:[%s11 + $0x54] sm:$0xf]
        %v1844 = vld [vmem:[%s11 + $0x58] sm:$0xf]
        %v1845 = vld [vmem:[%s11 + $0x5c] sm:$0xf]
        %v1846 = vld [vmem:[%s11 + $0x60] sm:$0xf]
        %v1847 = vld [vmem:[%s11 + $0x64] sm:$0xf]
        %v1848 = vld [vmem:[%s11 + $0x68] sm:$0xf]
        %v1849 = vld [vmem:[%s11 + $0x6c] sm:$0xf]
        %v1850 = vld [vmem:[%s11 + $0x70] sm:$0xf]
        %v1851 = vld [vmem:[%s11 + $0x74] sm:$0xf]
        %v1852 = vld [vmem:[%s11 + $0x78] sm:$0xf]
        %v1853 = vld [vmem:[%s11 + $0x7c] sm:$0xf]
        %v1854 = vpack.c.bf16 %v1820, %v1820
        %v1855 = vpack.c.bf16 %v1821, %v1821
        %v1856 = vld [vmem:[%s4 + $0x23] ss:$0 sm:$0xff]
        %v1889 = vunpack.c.l.b16 %v1822
        %v1890 = vunpack.c.l.b16 %v1823
        %v1891 = vunpack.c.l.b16 %v1824
        %v1892 = vunpack.c.l.b16 %v1825
        %v1893 = vunpack.c.l.b16 %v1826
        %v1894 = vunpack.c.l.b16 %v1827
        %v1895 = vunpack.c.l.b16 %v1828
        %v1896 = vunpack.c.l.b16 %v1829
        %v1897 = vunpack.c.l.b16 %v1830
        %v1898 = vunpack.c.l.b16 %v1831
        %v1899 = vunpack.c.l.b16 %v1832
        %v1900 = vunpack.c.l.b16 %v1833
        %v1901 = vunpack.c.l.b16 %v1834
        %v1902 = vunpack.c.l.b16 %v1835
        %v1903 = vunpack.c.l.b16 %v1836
        %v1904 = vunpack.c.l.b16 %v1837
        %v1905 = vunpack.c.l.b16 %v1838
        %v1906 = vunpack.c.l.b16 %v1839
        %v1907 = vunpack.c.l.b16 %v1840
        %v1908 = vunpack.c.l.b16 %v1841
        %v1909 = vunpack.c.l.b16 %v1842
        %v1910 = vunpack.c.l.b16 %v1843
        %v1911 = vunpack.c.l.b16 %v1844
        %v1912 = vunpack.c.l.b16 %v1845
        %v1913 = vunpack.c.l.b16 %v1846
        %v1914 = vunpack.c.l.b16 %v1847
        %v1915 = vunpack.c.l.b16 %v1848
        %v1916 = vunpack.c.l.b16 %v1849
        %v1917 = vunpack.c.l.b16 %v1850
        %v1918 = vunpack.c.l.b16 %v1851
        %v1919 = vunpack.c.l.b16 %v1852
        %v1920 = vunpack.c.l.b16 %v1853
        %v1921 = vpack.c.b16 %v1890, %v1889
        %v1922 = vpack.c.b16 %v1892, %v1891
        %v1923 = vpack.c.b16 %v1894, %v1893
        %v1924 = vpack.c.b16 %v1896, %v1895
        %v1925 = vpack.c.b16 %v1898, %v1897
        %v1926 = vpack.c.b16 %v1900, %v1899
        %v1927 = vpack.c.b16 %v1902, %v1901
        %v1928 = vpack.c.b16 %v1904, %v1903
        %v1929 = vpack.c.b16 %v1906, %v1905
        %v1930 = vpack.c.b16 %v1908, %v1907
        %v1931 = vpack.c.b16 %v1910, %v1909
        %v1932 = vpack.c.b16 %v1912, %v1911
        %v1933 = vpack.c.b16 %v1914, %v1913
        %v1934 = vpack.c.b16 %v1916, %v1915
        %v1935 = vpack.c.b16 %v1918, %v1917
        %v1936 = vpack.c.b16 %v1920, %v1919
        %1953 = vmatprep.subr.bf16.mxu0 0
        %1954 = vmatpush1.bf16.msra.mxu0 %v1921
        %1955 = vmatprep.subr.bf16.mxu0 0
        %1956 = vmatpush1.bf16.msra.mxu0 %v1922
        %1957 = vmatprep.subr.bf16.mxu0 0
        %1958 = vmatpush1.bf16.msra.mxu0 %v1923
        %1959 = vmatprep.subr.bf16.mxu0 0
        %1960 = vmatpush1.bf16.msra.mxu0 %v1924
        %1961 = vmatprep.subr.bf16.mxu0 0
        %1962 = vmatpush1.bf16.msra.mxu0 %v1925
        %1963 = vmatprep.subr.bf16.mxu0 0
        %1964 = vmatpush1.bf16.msra.mxu0 %v1926
        %1965 = vmatprep.subr.bf16.mxu0 0
        %1966 = vmatpush1.bf16.msra.mxu0 %v1927
        %1967 = vmatprep.subr.bf16.mxu0 0
        %1968 = vmatpush1.bf16.msra.mxu0 %v1928
        %1969 = vmatprep.subr.bf16.mxu0 0
        %1970 = vmatpush1.bf16.msra.mxu0 %v1929
        %1971 = vmatprep.subr.bf16.mxu0 0
        %1972 = vmatpush1.bf16.msra.mxu0 %v1930
        %1973 = vmatprep.subr.bf16.mxu0 0
        %1974 = vmatpush1.bf16.msra.mxu0 %v1931
        %1975 = vmatprep.subr.bf16.mxu0 0
        %1976 = vmatpush1.bf16.msra.mxu0 %v1932
        %1977 = vmatprep.subr.bf16.mxu0 0
        %1978 = vmatpush1.bf16.msra.mxu0 %v1933
        %1979 = vmatprep.subr.bf16.mxu0 0
        %1980 = vmatpush1.bf16.msra.mxu0 %v1934
        %1981 = vmatprep.subr.bf16.mxu0 0
        %1982 = vmatpush1.bf16.msra.mxu0 %v1935
        %1983 = vmatprep.subr.bf16.mxu0 0
        %1984 = vmatpush1.bf16.msra.mxu0 %v1936
        %1985 = vmatprep.mubr.bf16.mxu0 %v1855
        %1986 = vmatmul.mubr.bf16.gmra.mrb[0].mxu0 %v1854
        %v1987 = vpop.f32.mrb[0].mxu0
        %v1988 = vadd.f32 %v1856, %v1987
        %v1989 = vpop.f32.mrb[0].mxu0
        %v1990 = vpop.f32.mrb[0].mxu0
        %v1991 = vpop.f32.mrb[0].mxu0
        %1992 = vdwg.mxu0
        %vm1993 = vcmask 16384
        %1994 = vst.msk [vmem:[%s464] sm:$0x1] %vm1993, %v1988
        %v1995 = vld [vmem:[%s482] sm:$0x1]
        %v1996 = vsel %vm1993, %v1988, -inf
        %1997 = vmax.xlane.f32.xlu0 %v1996
        %v1998 = vpop.xlane.xlu0 %1997
        %v1999 = vsub.f32 %v1988, %v1998
        %v2000 = vmul.f32 %v1999, 1.442695
        %v2001 = vpow.pop %v2000
        %v2002 = vsel %vm1993, %v2001, 0.0
        %2003 = vadd.xlane.f32.xlu0 %v2002
        %v2004 = vpop.xlane.xlu0 %2003
        %v2005 = vlog2.pop %v2004
        %v2006 = vmul.f32 %v2005, 0.6931472
        %v2007 = vadd.f32 %v2006, %v1998
        %v2008 = vlaneseq
        %v2009 = vand.u32 %v2008, 127
        %2010 = vset.pattern.permute.xlu0 0
        %2011 = vperm.xlu0 %2010, %v1995
        %v2012 = vpop.permute.xlu0 %2011
        %v2013 = vlaneseq
        %v2014 = vshrl.u32 %v2013, 7
        %v2015 = vsub.s32 0, %v2014
        %v2016 = vrot.slane %v2012, %v2015
        %vm2017 = vcmp.eq.s32.totalorder %v2009, %v2016
        %v2018 = vsel %vm2017, %v1988, 0.0
        %v2019 = vsel %vm1993, %v2018, 0.0
        %2020 = vadd.xlane.f32.xlu0 %v2019
        %v2021 = vpop.xlane.xlu0 %2020
        %v2022 = vsub.f32 %v2007, %v2021
        %vm2023 = vcmask 0
        %2024 = vst.msk [vmem:[%s485] sm:$0x1] %vm2023, %v2022
        %s2025 = sand.u32 %s308, 1
        %s2026 = scalar_lea.sflag [#allocation3], %s2025
        %s2027 = sand.u32 %s308, 1
        %s2028 = scalar_lea.vmem [#allocation2], %s2027
        %p2029 = scmp.lt.s32.totalorder %s28, 1
        %s2030 = scalar_select %p2029, %s28, 1
        %s2031 = scalar_lea.vmem %s13, %s2030
        // Predicated region
        $region69: #{hybrid_bert_forward.1} parent=67 // pred_check
          %p2032 = pneg %p318
        $region70: #{hybrid_bert_forward.1} parent=67 // pred_check_branch
          %2034 = sbr.rel (%p2032) target = $region72
        $region71: #{hybrid_bert_forward.1} parent=67 // pred_region
          %s2036 = ssub.s32 16, 16
          %2037 = vsyncadd %s2026, %s2036
          %s2038 = smul.addr %s28, 16
          %s2039 = scalar_lea.hbm %s12, %s2038
          %s2041 = sshll.u32 %s2028, 4
          %s2042 = int_to_ptr.vmem [resolvable:$true] %s2041
          %2044 = dma.vmem_to_hbm [thread:$0]  %s2042, 16, %s2039, %s2026
        $region72: #{hybrid_bert_forward.1} parent=67 // pred_fallthru
          _
        // Predicated region
        $region73: #{hybrid_bert_forward.1} parent=67 // pred_check
          %p2045 = pneg %p344
        $region74: #{hybrid_bert_forward.1} parent=67 // pred_check_branch
          %2047 = sbr.rel (%p2045) target = $region76
        $region75: #{hybrid_bert_forward.1} parent=67 // pred_region
          _
        $region76: #{hybrid_bert_forward.1} parent=67 // pred_fallthru
          _
      $region68: #{hybrid_bert_forward.1} parent=5 // pred_fallthru
        _
      %p2048 = scmp.le.s32.totalorder 2, %s23
      // Predicated region
      $region77: #{hybrid_bert_forward.1} parent=5 // pred_check
        %p2049 = pneg %p2048
      $region78: #{hybrid_bert_forward.1} parent=5 // pred_check_branch
        %2051 = sbr.rel (%p2049) target = $region80
      $region79: #{hybrid_bert_forward.1} parent=5 // pred_region
        %s2052 = ssub.s32 %s23, 2
        // Predicated region
        $region81: #{hybrid_bert_forward.1} parent=79 // pred_check
          %p2053 = pneg %p324
        $region82: #{hybrid_bert_forward.1} parent=79 // pred_check_branch
          %2055 = sbr.rel (%p2053) target = $region84
        $region83: #{hybrid_bert_forward.1} parent=79 // pred_region
          %s2056 = sand.u32 %s309, 1
          %s2057 = scalar_lea.sflag [#allocation3], %s2056
          %s2058 = sand.u32 %s309, 1
          %s2059 = scalar_lea.vmem [#allocation2], %s2058
          %2060 = dma.done %s2057, 16
        $region84: #{hybrid_bert_forward.1} parent=79 // pred_fallthru
          _
        // Predicated region
        $region85: #{hybrid_bert_forward.1} parent=79 // pred_check
          %p2061 = pneg %p350
        $region86: #{hybrid_bert_forward.1} parent=79 // pred_check_branch
          %2063 = sbr.rel (%p2061) target = $region88
        $region87: #{hybrid_bert_forward.1} parent=79 // pred_region
          %p2064 = scmp.lt.s32.totalorder %s29, 1
          %s2065 = scalar_select %p2064, %s29, 1
          %s2066 = scalar_lea.vmem %s13, %s2065
        $region88: #{hybrid_bert_forward.1} parent=79 // pred_fallthru
          _
      $region80: #{hybrid_bert_forward.1} parent=5 // pred_fallthru
        _
    $region6: #{hybrid_bert_forward.1} parent=1 // loop_footer
      %s27 = sadd.s32 1, %s23
    $region7: #{hybrid_bert_forward.1} parent=1 // loop_footer_branch
      %22 = sbr.rel target = $region3
    $region8: #{hybrid_bert_forward.1} parent=1 // loop_exit
      _
    %2067 = vsyncpa [#allocation3], 1
    %s2068 = scalar_lea.sflag [#allocation3], 1
    %2069 = vsyncpa %s2068, 1

</llo_original>
